<compile_context>
chip_gen: v5e
topology: v5e:2x2
jax: 0.10.0
libtpu: 0.0.40
codegen_flags: <defaults>
</compile_context>

<pallas_src>
import math
import functools

import jax
import jax.numpy as jnp
from jax.experimental import pallas as pl
from jax.experimental.pallas import tpu as pltpu


# ----------------------------------------------------------------------------
# Kernel
# ----------------------------------------------------------------------------
def _encoder_layer_kernel(*refs, num_heads, head_dim, has_mask, has_kpm):
    H, hd = num_heads, head_dim
    E = H * hd
    eps = 1e-5
    scale = 1.0 / math.sqrt(hd)
    bf16, f32 = jnp.bfloat16, jnp.float32

    x_q_ref, x_kv_ref, ctx_ref = refs[0], refs[1], refs[2]
    idx = 3
    mask_ref = refs[idx] if has_mask else None
    idx += 1 if has_mask else 0
    kpm_ref = refs[idx] if has_kpm else None
    idx += 1 if has_kpm else 0
    (sa_wq, sa_bq, sa_wkv, sa_bkv, sa_wo, sa_bo,
     ca_wq, ca_wkv, ca_wo, ca_bo,
     ff_w1, ff_b1, ff_w2, ff_b2, ln_ref) = refs[idx:idx + 15]
    out_ref = refs[idx + 15]
    q_h, k_h, v_h, kc_h, vc_h, attn_sc = refs[idx + 16:idx + 22]

    x = x_q_ref[0]            # (bn, E) f32 residual stream / query tile

    # ---- per-batch K/V projections: compute once (first query tile of each
    #      batch) and cache in scratch, which persists across grid steps. ----
    @pl.when(pl.program_id(1) == 0)
    def _project_and_cache_kv():
        x_full = x_kv_ref[0]                       # (N, E) bf16
        ctx = ctx_ref[0]                           # (S, E) bf16
        kv = jnp.dot(x_full, sa_wkv[...], preferred_element_type=f32) + sa_bkv[...]
        kvc = jnp.dot(ctx, ca_wkv[...], preferred_element_type=f32)
        # TODO(synk): when hd < 128 these (H, *, hd) slabs pad lanes to 128;
        # pack 128/hd heads per lane-dense slab to recover the wasted VMEM.
        for h in range(H):
            lo, hi = h * hd, (h + 1) * hd
            k_h[h] = kv[:, lo:hi].astype(bf16)
            v_h[h] = kv[:, E + lo:E + hi].astype(bf16)
            kc_h[h] = kvc[:, lo:hi].astype(bf16)
            vc_h[h] = kvc[:, E + lo:E + hi].astype(bf16)

    def layernorm(y, wi, bi):
        g, b = ln_ref[wi], ln_ref[bi]              # hoisted row loads
        mu = jnp.mean(y, axis=-1, keepdims=True)
        var = jnp.mean(y * y, axis=-1, keepdims=True) - mu * mu   # one-pass
        return (y - mu) * jax.lax.rsqrt(var + eps) * g + b

    # ----------------- self attention (softmax over keys) -------------------
    q = jnp.dot(x.astype(bf16), sa_wq[...], preferred_element_type=f32) + sa_bq[...]
    for h in range(H):
        q_h[h] = q[:, h * hd:(h + 1) * hd].astype(bf16)

    s = jnp.einsum('hqd,hkd->hqk', q_h[...], k_h[...],
                   preferred_element_type=f32) * scale            # (H, bn, N)
    if has_mask:
        s = s + mask_ref[...][None]          # (bn, N) additive attn-mask
    if has_kpm:
        s = s + kpm_ref[...]                 # (1, 1, N) key-padding row bias
    m = jnp.max(s, axis=-1, keepdims=True)
    p = jnp.exp(s - m)
    l = jnp.sum(p, axis=-1, keepdims=True)
    p = p * pl.reciprocal(l, approx=True)    # EUP, ~2^-12 rel. error (documented)
    o = jnp.einsum('hqk,hkd->hqd', p.astype(bf16), v_h[...],
                   preferred_element_type=f32)                    # (H, bn, hd)
    # NOTE: merging heads through static lane-slice stores + one (bn,E)x(E,E)
    # dot keeps the MXU K dimension full; folding the merge into a batched
    # per-head projection would avoid the stores but pads each head's K to the
    # MXU width (E/hd x more passes when hd < 128), so the merged form is kept.
    # TODO(synk): for hd >= 128, fold the merge into the output projection.
    for h in range(H):
        attn_sc[:, h * hd:(h + 1) * hd] = o[h].astype(bf16)
    sa_out = jnp.dot(attn_sc[...], sa_wo[...], preferred_element_type=f32) + sa_bo[...]
    x = layernorm(x + sa_out, 0, 1)

    # --------- cross attention (softmax over HEADS, per reference) ----------
    qc = jnp.dot(x.astype(bf16), ca_wq[...], preferred_element_type=f32)
    for h in range(H):
        q_h[h] = qc[:, h * hd:(h + 1) * hd].astype(bf16)

    sc = jnp.einsum('hqd,hsd->hqs', q_h[...], kc_h[...],
                    preferred_element_type=f32) * scale           # (H, bn, S)
    mc = jnp.max(sc, axis=0, keepdims=True)                       # softmax over heads
    pc = jnp.exp(sc - mc)
    dc = jnp.sum(pc, axis=0, keepdims=True)
    pc = pc * pl.reciprocal(dc, approx=True)
    oc = jnp.einsum('hqs,hsd->hqd', pc.astype(bf16), vc_h[...],
                    preferred_element_type=f32)                   # (H, bn, hd)
    for h in range(H):
        attn_sc[:, h * hd:(h + 1) * hd] = oc[h].astype(bf16)
    ca_out = jnp.dot(attn_sc[...], ca_wo[...], preferred_element_type=f32) + ca_bo[...]
    x = layernorm(x + ca_out, 2, 3)

    # ----------------- feed forward -----------------------------------------
    h1 = jnp.dot(x.astype(bf16), ff_w1[...], preferred_element_type=f32) + ff_b1[...]
    h1 = jnp.maximum(h1, 0.0)
    ff = jnp.dot(h1.astype(bf16), ff_w2[...], preferred_element_type=f32) + ff_b2[...]
    x = layernorm(x + ff, 4, 5)

    out_ref[0] = x.astype(out_ref.dtype)


# ----------------------------------------------------------------------------
# VMEM budget audit (single-buffered weights + double-buffered activation
# blocks + scratch + a bound on live intermediates), clamped to [32, 64] MiB.
# ----------------------------------------------------------------------------
def _vmem_limit_bytes(weights, N, S, E, H, hd, bn, has_mask, has_kpm):
    wbytes = sum(int(w.size) * w.dtype.itemsize for w in weights)
    act = 2 * (bn * E * 4 + N * E * 2 + S * E * 2 + bn * E * 4)
    if has_mask:
        act += 2 * bn * N * 4
    if has_kpm:
        act += 2 * N * 4
    scratch = (H * bn * hd + 2 * H * N * hd + 2 * H * S * hd + bn * E) * 2
    live = 2 * H * bn * max(N, S) * 4 + bn * 4 * E * 4
    total = wbytes + act + scratch + live
    return int(min(max(2 * total + (8 << 20), 32 << 20), 64 << 20))


# ----------------------------------------------------------------------------
# Wrapper
# ----------------------------------------------------------------------------
def transformer_encoder_layer_with_cross_attention(
        src, src_mask, src_key_padding_mask, context, params, num_heads,
        block_n=128):
    """src: (N, B, E) f32 seq-first, context: (B, S, E) f32. Returns (N, B, E)."""
    N, B, E = src.shape
    S = context.shape[1]
    H = num_heads
    hd = E // H
    f32, bf16 = jnp.float32, jnp.bfloat16

    # TODO(synk): the surrounding model could keep batch-first activations to
    # avoid these two full-tensor HBM transposes.
    x = jnp.transpose(src, (1, 0, 2)).astype(f32)      # (B, N, E) residual / queries
    x_kv = x.astype(bf16)                              # K/V source (bf16 halves DMA)
    ctx = context.astype(bf16)                         # (B, S, E)

    has_mask = src_mask is not None
    has_kpm = src_key_padding_mask is not None

    inputs = [x, x_kv, ctx]
    if has_mask:
        sm = src_mask
        if sm.dtype == jnp.bool_:
            sm = jnp.where(sm, jnp.float32(-1e30), jnp.float32(0.0))
        inputs.append(sm.astype(f32))                  # (N, N) additive, kept f32
    if has_kpm:
        kpm_bias = jnp.where(src_key_padding_mask.astype(bool),
                             jnp.float32(-1e30), jnp.float32(0.0)).reshape(B, 1, N)
        inputs.append(kpm_bias)                        # (B, 1, N) additive row bias

    # Query-tile size (kept = N for small / non-divisible N).
    # NOTE: on v6e bn=256 better fills the 256-wide MXU; on v5e/v7x keep 128.
    if N <= block_n or (N % block_n) != 0:
        bn = N
    else:
        bn = block_n
    n_tiles = N // bn

    # --- weight packing: fused KV projections, bf16 weights, packed LN params ---
    p = params
    w_q = p["sa_in_w"][:E].T.astype(bf16)                                   # (E, E)
    w_kv = p["sa_in_w"][E:].T.astype(bf16)                                  # (E, 2E) [k|v]
    b_q = p["sa_in_b"][:E].reshape(1, E).astype(f32)
    b_kv = p["sa_in_b"][E:].reshape(1, 2 * E).astype(f32)
    w_o = p["sa_out_w"].T.astype(bf16)                                      # (E, E)
    b_o = p["sa_out_b"].reshape(1, E).astype(f32)
    c_wq = p["ca_q_w"].T.astype(bf16)                                       # (E, E)
    c_wkv = jnp.concatenate([p["ca_k_w"].T, p["ca_v_w"].T], axis=1).astype(bf16)  # (E, 2E)
    c_wo = p["ca_out_w"].T.astype(bf16)
    c_bo = p["ca_out_b"].reshape(1, E).astype(f32)
    f_w1 = p["l1_w"].T.astype(bf16)                                         # (E, 4E)
    f_b1 = p["l1_b"].reshape(1, 4 * E).astype(f32)
    f_w2 = p["l2_w"].T.astype(bf16)                                         # (4E, E)
    f_b2 = p["l2_b"].reshape(1, E).astype(f32)
    ln = jnp.stack([p["n1_w"], p["n1_b"], p["n2_w"], p["n2_b"],
                    p["n3_w"], p["n3_b"]]).astype(f32)                      # (6, E)

    weights = [w_q, b_q, w_kv, b_kv, w_o, b_o,
               c_wq, c_wkv, c_wo, c_bo,
               f_w1, f_b1, f_w2, f_b2, ln]

    # Constant weights: whole-array resident in VMEM, single-buffered
    # (no double-buffering of constant-index blocks).
    in_specs = [
        pl.BlockSpec((1, bn, E), lambda b, n: (b, n, 0)),   # query / residual tile (f32)
        pl.BlockSpec((1, N, E), lambda b, n: (b, 0, 0)),    # full sequence, bf16 (self K/V)
        pl.BlockSpec((1, S, E), lambda b, n: (b, 0, 0)),    # context, bf16 (cross K/V)
    ]
    if has_mask:
        in_specs.append(pl.BlockSpec((bn, N), lambda b, n: (n, 0)))
    if has_kpm:
        in_specs.append(pl.BlockSpec((1, 1, N), lambda b, n: (b, 0, 0)))
    in_specs += [pl.BlockSpec(memory_space=pltpu.MemorySpace.VMEM)
                 for _ in weights]

    scratch_shapes = [
        pltpu.VMEM((H, bn, hd), bf16),   # q heads (reused by cross-attn q)
        pltpu.VMEM((H, N, hd), bf16),    # self-attn k heads   (cached per batch)
        pltpu.VMEM((H, N, hd), bf16),    # self-attn v heads   (cached per batch)
        pltpu.VMEM((H, S, hd), bf16),    # cross-attn k heads  (cached per batch)
        pltpu.VMEM((H, S, hd), bf16),    # cross-attn v heads  (cached per batch)
        pltpu.VMEM((bn, E), bf16),       # re-assembled per-head attention output
    ]

    kernel = functools.partial(_encoder_layer_kernel, num_heads=H, head_dim=hd,
                               has_mask=has_mask, has_kpm=has_kpm)

    vmem_limit = _vmem_limit_bytes(weights, N, S, E, H, hd, bn, has_mask, has_kpm)

    out = pl.pallas_call(
        kernel,
        out_shape=jax.ShapeDtypeStruct((B, N, E), f32),
        grid=(B, n_tiles),
        in_specs=in_specs,
        out_specs=pl.BlockSpec((1, bn, E), lambda b, n: (b, n, 0)),
        scratch_shapes=scratch_shapes,
        compiler_params=pltpu.CompilerParams(
            # batch stays "parallel" (v7x megacore splits over batch); the query
            # tile axis must be "arbitrary" because the per-batch K/V cache in
            # scratch requires n to run sequentially from 0 on one core.
            dimension_semantics=("parallel", "arbitrary"),
            vmem_limit_bytes=vmem_limit),
    )(*inputs, *weights)

    return jnp.transpose(out, (1, 0, 2))                 # back to (N, B, E)


# ----------------------------------------------------------------------------
# Deterministic parameter init (shapes follow the PyTorch module)
# ----------------------------------------------------------------------------
def init_params(key, embed_dim):
    E = embed_dim
    ks = jax.random.split(key, 16)
    g = lambda k, shape: (jax.random.normal(k, shape, jnp.float32) * 0.05)
    return {
        # nn.MultiheadAttention
        "sa_in_w": g(ks[0], (3 * E, E)),
        "sa_in_b": g(ks[1], (3 * E,)),
        "sa_out_w": g(ks[2], (E, E)),
        "sa_out_b": g(ks[3], (E,)),
        # CrossAttention
        "ca_q_w": g(ks[4], (E, E)),
        "ca_k_w": g(ks[5], (E, E)),
        "ca_v_w": g(ks[6], (E, E)),
        "ca_out_w": g(ks[7], (E, E)),
        "ca_out_b": g(ks[8], (E,)),
        # FFN
        "l1_w": g(ks[9], (4 * E, E)),
        "l1_b": g(ks[10], (4 * E,)),
        "l2_w": g(ks[11], (E, 4 * E)),
        "l2_b": g(ks[12], (E,)),
        # LayerNorms
        "n1_w": 1.0 + g(ks[13], (E,)), "n1_b": g(ks[13], (E,)) * 0.0,
        "n2_w": 1.0 + g(ks[14], (E,)), "n2_b": g(ks[14], (E,)) * 0.0,
        "n3_w": 1.0 + g(ks[15], (E,)), "n3_b": g(ks[15], (E,)) * 0.0,
    }


# ----------------------------------------------------------------------------
# Pure-JAX reference (mirrors the PyTorch forward, eval mode)
# ----------------------------------------------------------------------------
def reference(src, src_mask, kpm, context, p, H):
    N, B, E = src.shape
    hd = E // H
    scale = hd ** -0.5
    x = jnp.transpose(src, (1, 0, 2))                       # (B, N, E)

    bias = jnp.zeros((B, N, N), jnp.float32)
    if src_mask is not None:
        bias = bias + src_mask[None]
    if kpm is not None:
        bias = jnp.where(kpm[:, None, :], jnp.float32(-1e30), bias)

    def ln(y, w, b):
        mu = y.mean(-1, keepdims=True)
        var = ((y - mu) ** 2).mean(-1, keepdims=True)
        return (y - mu) / jnp.sqrt(var + 1e-5) * w + b

    # self attention
    q = (x @ p["sa_in_w"][:E].T + p["sa_in_b"][:E]).reshape(B, N, H, hd)
    k = (x @ p["sa_in_w"][E:2 * E].T + p["sa_in_b"][E:2 * E]).reshape(B, N, H, hd)
    v = (x @ p["sa_in_w"][2 * E:].T + p["sa_in_b"][2 * E:]).reshape(B, N, H, hd)
    s = jnp.einsum("bnhd,bmhd->bhnm", q, k) * scale + bias[:, None]
    pr = jax.nn.softmax(s, -1)
    o = jnp.einsum("bhnm,bmhd->bnhd", pr, v).reshape(B, N, E)
    o = o @ p["sa_out_w"].T + p["sa_out_b"]
    x = ln(x + o, p["n1_w"], p["n1_b"])

    # cross attention (softmax over heads, as in the reference module)
    qc = (x @ p["ca_q_w"].T).reshape(B, N, H, hd)
    kc = (context @ p["ca_k_w"].T).reshape(B, -1, H, hd)
    vc = (context @ p["ca_v_w"].T).reshape(B, -1, H, hd)
    sc = jnp.einsum("bnhd,bshd->bnsh", qc, kc) * scale
    pc = jax.nn.softmax(sc, -1)
    oc = jnp.einsum("bnsh,bshd->bnhd", pc, vc).reshape(B, N, E)
    oc = oc @ p["ca_out_w"].T + p["ca_out_b"]
    x = ln(x + oc, p["n2_w"], p["n2_b"])

    # feed forward
    h1 = jax.nn.relu(x @ p["l1_w"].T + p["l1_b"])
    ff = h1 @ p["l2_w"].T + p["l2_b"]
    x = ln(x + ff, p["n3_w"], p["n3_b"])
    return jnp.transpose(x, (1, 0, 2))


# ----------------------------------------------------------------------------
if __name__ == "__main__":
    B, N, S, E, H = 2, 8, 8, 32, 4

    key = jax.random.PRNGKey(0)
    k_src, k_ctx, k_par = jax.random.split(key, 3)

    src = jax.random.normal(k_src, (N, B, E), jnp.float32)       # seq-first
    context = jax.random.normal(k_ctx, (B, S, E), jnp.float32)
    params = init_params(k_par, E)

    # TODO(synk): dropout layers are identity here (eval mode).

    # ---- no masks: mask-free kernel variant (no bias tensors are built/DMA'd) ----
    out = transformer_encoder_layer_with_cross_attention(
        src, None, None, context, params, num_heads=H)
    out = jax.block_until_ready(out)
    ref = jax.block_until_ready(reference(src, None, None, context, params, H))
    assert out.shape == (N, B, E)
    assert bool(jnp.all(jnp.isfinite(out)))
    err = float(jnp.max(jnp.abs(out - ref)))
    assert bool(jnp.allclose(out, ref, atol=5e-2, rtol=5e-2)), \
        "no-mask mismatch vs reference: max abs err " + str(err)

    # ---- with attn_mask + key_padding_mask: exercises both bias inputs ----
    causal = jnp.where(jnp.triu(jnp.ones((N, N), bool), k=1),
                       jnp.float32(-1e9), jnp.float32(0.0))
    kpm = jnp.zeros((B, N), bool).at[0, -1].set(True)
    out_m = transformer_encoder_layer_with_cross_attention(
        src, causal, kpm, context, params, num_heads=H)
    out_m = jax.block_until_ready(out_m)
    ref_m = jax.block_until_ready(reference(src, causal, kpm, context, params, H))
    err_m = float(jnp.max(jnp.abs(out_m - ref_m)))
    assert bool(jnp.all(jnp.isfinite(out_m)))
    assert bool(jnp.allclose(out_m, ref_m, atol=5e-2, rtol=5e-2)), \
        "masked mismatch vs reference: max abs err " + str(err_m)

    print("KERNEL_OK")
</pallas_src>

<mosaic_0001>
module attributes {stable_mosaic.version = 11 : i64} {
  func.func @_encoder_layer_kernel(%arg0: i32, %arg1: i32, %arg2: memref<1x8x32xf32, #tpu.memory_space<vmem>>, %arg3: memref<1x8x32xbf16, #tpu.memory_space<vmem>>, %arg4: memref<1x8x32xbf16, #tpu.memory_space<vmem>>, %arg5: memref<32x32xbf16, #tpu.memory_space<vmem>>, %arg6: memref<1x32xf32, #tpu.memory_space<vmem>>, %arg7: memref<32x64xbf16, #tpu.memory_space<vmem>>, %arg8: memref<1x64xf32, #tpu.memory_space<vmem>>, %arg9: memref<32x32xbf16, #tpu.memory_space<vmem>>, %arg10: memref<1x32xf32, #tpu.memory_space<vmem>>, %arg11: memref<32x32xbf16, #tpu.memory_space<vmem>>, %arg12: memref<32x64xbf16, #tpu.memory_space<vmem>>, %arg13: memref<32x32xbf16, #tpu.memory_space<vmem>>, %arg14: memref<1x32xf32, #tpu.memory_space<vmem>>, %arg15: memref<32x128xbf16, #tpu.memory_space<vmem>>, %arg16: memref<1x128xf32, #tpu.memory_space<vmem>>, %arg17: memref<128x32xbf16, #tpu.memory_space<vmem>>, %arg18: memref<1x32xf32, #tpu.memory_space<vmem>>, %arg19: memref<6x32xf32, #tpu.memory_space<vmem>>, %arg20: memref<1x8x32xf32, #tpu.memory_space<vmem>>, %arg21: memref<4x8x8xbf16, #tpu.memory_space<vmem>>, %arg22: memref<4x8x8xbf16, #tpu.memory_space<vmem>>, %arg23: memref<4x8x8xbf16, #tpu.memory_space<vmem>>, %arg24: memref<4x8x8xbf16, #tpu.memory_space<vmem>>, %arg25: memref<4x8x8xbf16, #tpu.memory_space<vmem>>, %arg26: memref<8x32xbf16, #tpu.memory_space<vmem>>) attributes {dimension_semantics = [#tpu.dimension_semantics<parallel>, #tpu.dimension_semantics<arbitrary>], iteration_bounds = array<i64: 2, 1>, scalar_prefetch = 0 : i64, scratch_operands = 6 : i64, tpu.core_type = #tpu.core_type<tc>, window_params = [{transform_indices = @transform_0, window_bounds = array<i64: 1, 8, 32>}, {transform_indices = @transform_1, window_bounds = array<i64: 1, 8, 32>}, {transform_indices = @transform_2, window_bounds = array<i64: 1, 8, 32>}, {pipeline_mode = #tpu.pipeline_mode<synchronous>, transform_indices = @transform_3, window_bounds = array<i64: 32, 32>}, {pipeline_mode = #tpu.pipeline_mode<synchronous>, transform_indices = @transform_4, window_bounds = array<i64: 1, 32>}, {pipeline_mode = #tpu.pipeline_mode<synchronous>, transform_indices = @transform_5, window_bounds = array<i64: 32, 64>}, {pipeline_mode = #tpu.pipeline_mode<synchronous>, transform_indices = @transform_6, window_bounds = array<i64: 1, 64>}, {pipeline_mode = #tpu.pipeline_mode<synchronous>, transform_indices = @transform_7, window_bounds = array<i64: 32, 32>}, {pipeline_mode = #tpu.pipeline_mode<synchronous>, transform_indices = @transform_8, window_bounds = array<i64: 1, 32>}, {pipeline_mode = #tpu.pipeline_mode<synchronous>, transform_indices = @transform_9, window_bounds = array<i64: 32, 32>}, {pipeline_mode = #tpu.pipeline_mode<synchronous>, transform_indices = @transform_10, window_bounds = array<i64: 32, 64>}, {pipeline_mode = #tpu.pipeline_mode<synchronous>, transform_indices = @transform_11, window_bounds = array<i64: 32, 32>}, {pipeline_mode = #tpu.pipeline_mode<synchronous>, transform_indices = @transform_12, window_bounds = array<i64: 1, 32>}, {pipeline_mode = #tpu.pipeline_mode<synchronous>, transform_indices = @transform_13, window_bounds = array<i64: 32, 128>}, {pipeline_mode = #tpu.pipeline_mode<synchronous>, transform_indices = @transform_14, window_bounds = array<i64: 1, 128>}, {pipeline_mode = #tpu.pipeline_mode<synchronous>, transform_indices = @transform_15, window_bounds = array<i64: 128, 32>}, {pipeline_mode = #tpu.pipeline_mode<synchronous>, transform_indices = @transform_16, window_bounds = array<i64: 1, 32>}, {pipeline_mode = #tpu.pipeline_mode<synchronous>, transform_indices = @transform_17, window_bounds = array<i64: 6, 32>}, {transform_indices = @transform_18, window_bounds = array<i64: 1, 8, 32>}]} {
    %c0 = arith.constant 0 : index
    %c0_0 = arith.constant 0 : index
    %c0_1 = arith.constant 0 : index
    %0 = vector.load %arg2[%c0, %c0_0, %c0_1] : memref<1x8x32xf32, #tpu.memory_space<vmem>>, vector<1x8x32xf32>
    %1 = vector.shape_cast %0 : vector<1x8x32xf32> to vector<8x32xf32>
    %c0_i32 = arith.constant 0 : i32
    %2 = arith.cmpi eq, %arg1, %c0_i32 : i32
    %3 = arith.extui %2 : i1 to i32
    %c0_i32_2 = arith.constant 0 : i32
    %4 = arith.cmpi ne, %3, %c0_i32_2 : i32
    scf.if %4 {
      %c0_125 = arith.constant 0 : index
      %c0_126 = arith.constant 0 : index
      %c0_127 = arith.constant 0 : index
      %238 = vector.load %arg3[%c0_125, %c0_126, %c0_127] : memref<1x8x32xbf16, #tpu.memory_space<vmem>>, vector<1x8x32xbf16>
      %239 = vector.shape_cast %238 : vector<1x8x32xbf16> to vector<8x32xbf16>
      %c0_128 = arith.constant 0 : index
      %c0_129 = arith.constant 0 : index
      %c0_130 = arith.constant 0 : index
      %240 = vector.load %arg4[%c0_128, %c0_129, %c0_130] : memref<1x8x32xbf16, #tpu.memory_space<vmem>>, vector<1x8x32xbf16>
      %241 = vector.shape_cast %240 : vector<1x8x32xbf16> to vector<8x32xbf16>
      %c0_131 = arith.constant 0 : index
      %c0_132 = arith.constant 0 : index
      %242 = vector.load %arg7[%c0_131, %c0_132] : memref<32x64xbf16, #tpu.memory_space<vmem>>, vector<32x64xbf16>
      %cst_133 = arith.constant dense<0.000000e+00> : vector<8x64xf32>
      %243 = tpu.matmul %239, %242, %cst_133 {dimension_numbers = #tpu.dot_dimension_numbers<[1], [0], [0], [1], [0, 0, 1, 1], [], []>} : vector<8x32xbf16>, vector<32x64xbf16>, vector<8x64xf32> -> vector<8x64xf32>
      %c0_134 = arith.constant 0 : index
      %c0_135 = arith.constant 0 : index
      %244 = vector.load %arg8[%c0_134, %c0_135] : memref<1x64xf32, #tpu.memory_space<vmem>>, vector<1x64xf32>
      %245 = vector.broadcast %244 : vector<1x64xf32> to vector<8x64xf32>
      %246 = arith.addf %243, %245 : vector<8x64xf32>
      %c0_136 = arith.constant 0 : index
      %c0_137 = arith.constant 0 : index
      %247 = vector.load %arg12[%c0_136, %c0_137] : memref<32x64xbf16, #tpu.memory_space<vmem>>, vector<32x64xbf16>
      %cst_138 = arith.constant dense<0.000000e+00> : vector<8x64xf32>
      %248 = tpu.matmul %241, %247, %cst_138 {dimension_numbers = #tpu.dot_dimension_numbers<[1], [0], [0], [1], [0, 0, 1, 1], [], []>} : vector<8x32xbf16>, vector<32x64xbf16>, vector<8x64xf32> -> vector<8x64xf32>
      %249 = vector.extract_strided_slice %246 {offsets = [0, 0], sizes = [8, 8], strides = [1, 1]} : vector<8x64xf32> to vector<8x8xf32>
      %250 = arith.truncf %249 : vector<8x8xf32> to vector<8x8xbf16>
      %c0_139 = arith.constant 0 : index
      %c0_140 = arith.constant 0 : index
      %c0_141 = arith.constant 0 : index
      %251 = vector.load %arg22[%c0_139, %c0_140, %c0_141] : memref<4x8x8xbf16, #tpu.memory_space<vmem>>, vector<1x8x8xbf16>
      %252 = vector.shape_cast %251 : vector<1x8x8xbf16> to vector<8x8xbf16>
      %253 = vector.shape_cast %250 : vector<8x8xbf16> to vector<1x8x8xbf16>
      tpu.vector_store %arg22[%c0_139, %c0_140, %c0_141], %253 {strides = array<i32>} : memref<4x8x8xbf16, #tpu.memory_space<vmem>>, vector<1x8x8xbf16>,
      %254 = vector.extract_strided_slice %246 {offsets = [0, 32], sizes = [8, 8], strides = [1, 1]} : vector<8x64xf32> to vector<8x8xf32>
      %255 = arith.truncf %254 : vector<8x8xf32> to vector<8x8xbf16>
      %c0_142 = arith.constant 0 : index
      %c0_143 = arith.constant 0 : index
      %c0_144 = arith.constant 0 : index
      %256 = vector.load %arg23[%c0_142, %c0_143, %c0_144] : memref<4x8x8xbf16, #tpu.memory_space<vmem>>, vector<1x8x8xbf16>
      %257 = vector.shape_cast %256 : vector<1x8x8xbf16> to vector<8x8xbf16>
      %258 = vector.shape_cast %255 : vector<8x8xbf16> to vector<1x8x8xbf16>
      tpu.vector_store %arg23[%c0_142, %c0_143, %c0_144], %258 {strides = array<i32>} : memref<4x8x8xbf16, #tpu.memory_space<vmem>>, vector<1x8x8xbf16>,
      %259 = vector.extract_strided_slice %248 {offsets = [0, 0], sizes = [8, 8], strides = [1, 1]} : vector<8x64xf32> to vector<8x8xf32>
      %260 = arith.truncf %259 : vector<8x8xf32> to vector<8x8xbf16>
      %c0_145 = arith.constant 0 : index
      %c0_146 = arith.constant 0 : index
      %c0_147 = arith.constant 0 : index
      %261 = vector.load %arg24[%c0_145, %c0_146, %c0_147] : memref<4x8x8xbf16, #tpu.memory_space<vmem>>, vector<1x8x8xbf16>
      %262 = vector.shape_cast %261 : vector<1x8x8xbf16> to vector<8x8xbf16>
      %263 = vector.shape_cast %260 : vector<8x8xbf16> to vector<1x8x8xbf16>
      tpu.vector_store %arg24[%c0_145, %c0_146, %c0_147], %263 {strides = array<i32>} : memref<4x8x8xbf16, #tpu.memory_space<vmem>>, vector<1x8x8xbf16>,
      %264 = vector.extract_strided_slice %248 {offsets = [0, 32], sizes = [8, 8], strides = [1, 1]} : vector<8x64xf32> to vector<8x8xf32>
      %265 = arith.truncf %264 : vector<8x8xf32> to vector<8x8xbf16>
      %c0_148 = arith.constant 0 : index
      %c0_149 = arith.constant 0 : index
      %c0_150 = arith.constant 0 : index
      %266 = vector.load %arg25[%c0_148, %c0_149, %c0_150] : memref<4x8x8xbf16, #tpu.memory_space<vmem>>, vector<1x8x8xbf16>
      %267 = vector.shape_cast %266 : vector<1x8x8xbf16> to vector<8x8xbf16>
      %268 = vector.shape_cast %265 : vector<8x8xbf16> to vector<1x8x8xbf16>
      tpu.vector_store %arg25[%c0_148, %c0_149, %c0_150], %268 {strides = array<i32>} : memref<4x8x8xbf16, #tpu.memory_space<vmem>>, vector<1x8x8xbf16>,
      %269 = vector.extract_strided_slice %246 {offsets = [0, 8], sizes = [8, 8], strides = [1, 1]} : vector<8x64xf32> to vector<8x8xf32>
      %270 = arith.truncf %269 : vector<8x8xf32> to vector<8x8xbf16>
      %c1_151 = arith.constant 1 : index
      %c0_152 = arith.constant 0 : index
      %c0_153 = arith.constant 0 : index
      %271 = vector.load %arg22[%c1_151, %c0_152, %c0_153] : memref<4x8x8xbf16, #tpu.memory_space<vmem>>, vector<1x8x8xbf16>
      %272 = vector.shape_cast %271 : vector<1x8x8xbf16> to vector<8x8xbf16>
      %273 = vector.shape_cast %270 : vector<8x8xbf16> to vector<1x8x8xbf16>
      tpu.vector_store %arg22[%c1_151, %c0_152, %c0_153], %273 {strides = array<i32>} : memref<4x8x8xbf16, #tpu.memory_space<vmem>>, vector<1x8x8xbf16>,
      %274 = vector.extract_strided_slice %246 {offsets = [0, 40], sizes = [8, 8], strides = [1, 1]} : vector<8x64xf32> to vector<8x8xf32>
      %275 = arith.truncf %274 : vector<8x8xf32> to vector<8x8xbf16>
      %c1_154 = arith.constant 1 : index
      %c0_155 = arith.constant 0 : index
      %c0_156 = arith.constant 0 : index
      %276 = vector.load %arg23[%c1_154, %c0_155, %c0_156] : memref<4x8x8xbf16, #tpu.memory_space<vmem>>, vector<1x8x8xbf16>
      %277 = vector.shape_cast %276 : vector<1x8x8xbf16> to vector<8x8xbf16>
      %278 = vector.shape_cast %275 : vector<8x8xbf16> to vector<1x8x8xbf16>
      tpu.vector_store %arg23[%c1_154, %c0_155, %c0_156], %278 {strides = array<i32>} : memref<4x8x8xbf16, #tpu.memory_space<vmem>>, vector<1x8x8xbf16>,
      %279 = vector.extract_strided_slice %248 {offsets = [0, 8], sizes = [8, 8], strides = [1, 1]} : vector<8x64xf32> to vector<8x8xf32>
      %280 = arith.truncf %279 : vector<8x8xf32> to vector<8x8xbf16>
      %c1_157 = arith.constant 1 : index
      %c0_158 = arith.constant 0 : index
      %c0_159 = arith.constant 0 : index
      %281 = vector.load %arg24[%c1_157, %c0_158, %c0_159] : memref<4x8x8xbf16, #tpu.memory_space<vmem>>, vector<1x8x8xbf16>
      %282 = vector.shape_cast %281 : vector<1x8x8xbf16> to vector<8x8xbf16>
      %283 = vector.shape_cast %280 : vector<8x8xbf16> to vector<1x8x8xbf16>
      tpu.vector_store %arg24[%c1_157, %c0_158, %c0_159], %283 {strides = array<i32>} : memref<4x8x8xbf16, #tpu.memory_space<vmem>>, vector<1x8x8xbf16>,
      %284 = vector.extract_strided_slice %248 {offsets = [0, 40], sizes = [8, 8], strides = [1, 1]} : vector<8x64xf32> to vector<8x8xf32>
      %285 = arith.truncf %284 : vector<8x8xf32> to vector<8x8xbf16>
      %c1_160 = arith.constant 1 : index
      %c0_161 = arith.constant 0 : index
      %c0_162 = arith.constant 0 : index
      %286 = vector.load %arg25[%c1_160, %c0_161, %c0_162] : memref<4x8x8xbf16, #tpu.memory_space<vmem>>, vector<1x8x8xbf16>
      %287 = vector.shape_cast %286 : vector<1x8x8xbf16> to vector<8x8xbf16>
      %288 = vector.shape_cast %285 : vector<8x8xbf16> to vector<1x8x8xbf16>
      tpu.vector_store %arg25[%c1_160, %c0_161, %c0_162], %288 {strides = array<i32>} : memref<4x8x8xbf16, #tpu.memory_space<vmem>>, vector<1x8x8xbf16>,
      %289 = vector.extract_strided_slice %246 {offsets = [0, 16], sizes = [8, 8], strides = [1, 1]} : vector<8x64xf32> to vector<8x8xf32>
      %290 = arith.truncf %289 : vector<8x8xf32> to vector<8x8xbf16>
      %c2_163 = arith.constant 2 : index
      %c0_164 = arith.constant 0 : index
      %c0_165 = arith.constant 0 : index
      %291 = vector.load %arg22[%c2_163, %c0_164, %c0_165] : memref<4x8x8xbf16, #tpu.memory_space<vmem>>, vector<1x8x8xbf16>
      %292 = vector.shape_cast %291 : vector<1x8x8xbf16> to vector<8x8xbf16>
      %293 = vector.shape_cast %290 : vector<8x8xbf16> to vector<1x8x8xbf16>
      tpu.vector_store %arg22[%c2_163, %c0_164, %c0_165], %293 {strides = array<i32>} : memref<4x8x8xbf16, #tpu.memory_space<vmem>>, vector<1x8x8xbf16>,
      %294 = vector.extract_strided_slice %246 {offsets = [0, 48], sizes = [8, 8], strides = [1, 1]} : vector<8x64xf32> to vector<8x8xf32>
      %295 = arith.truncf %294 : vector<8x8xf32> to vector<8x8xbf16>
      %c2_166 = arith.constant 2 : index
      %c0_167 = arith.constant 0 : index
      %c0_168 = arith.constant 0 : index
      %296 = vector.load %arg23[%c2_166, %c0_167, %c0_168] : memref<4x8x8xbf16, #tpu.memory_space<vmem>>, vector<1x8x8xbf16>
      %297 = vector.shape_cast %296 : vector<1x8x8xbf16> to vector<8x8xbf16>
      %298 = vector.shape_cast %295 : vector<8x8xbf16> to vector<1x8x8xbf16>
      tpu.vector_store %arg23[%c2_166, %c0_167, %c0_168], %298 {strides = array<i32>} : memref<4x8x8xbf16, #tpu.memory_space<vmem>>, vector<1x8x8xbf16>,
      %299 = vector.extract_strided_slice %248 {offsets = [0, 16], sizes = [8, 8], strides = [1, 1]} : vector<8x64xf32> to vector<8x8xf32>
      %300 = arith.truncf %299 : vector<8x8xf32> to vector<8x8xbf16>
      %c2_169 = arith.constant 2 : index
      %c0_170 = arith.constant 0 : index
      %c0_171 = arith.constant 0 : index
      %301 = vector.load %arg24[%c2_169, %c0_170, %c0_171] : memref<4x8x8xbf16, #tpu.memory_space<vmem>>, vector<1x8x8xbf16>
      %302 = vector.shape_cast %301 : vector<1x8x8xbf16> to vector<8x8xbf16>
      %303 = vector.shape_cast %300 : vector<8x8xbf16> to vector<1x8x8xbf16>
      tpu.vector_store %arg24[%c2_169, %c0_170, %c0_171], %303 {strides = array<i32>} : memref<4x8x8xbf16, #tpu.memory_space<vmem>>, vector<1x8x8xbf16>,
      %304 = vector.extract_strided_slice %248 {offsets = [0, 48], sizes = [8, 8], strides = [1, 1]} : vector<8x64xf32> to vector<8x8xf32>
      %305 = arith.truncf %304 : vector<8x8xf32> to vector<8x8xbf16>
      %c2_172 = arith.constant 2 : index
      %c0_173 = arith.constant 0 : index
      %c0_174 = arith.constant 0 : index
      %306 = vector.load %arg25[%c2_172, %c0_173, %c0_174] : memref<4x8x8xbf16, #tpu.memory_space<vmem>>, vector<1x8x8xbf16>
      %307 = vector.shape_cast %306 : vector<1x8x8xbf16> to vector<8x8xbf16>
      %308 = vector.shape_cast %305 : vector<8x8xbf16> to vector<1x8x8xbf16>
      tpu.vector_store %arg25[%c2_172, %c0_173, %c0_174], %308 {strides = array<i32>} : memref<4x8x8xbf16, #tpu.memory_space<vmem>>, vector<1x8x8xbf16>,
      %309 = vector.extract_strided_slice %246 {offsets = [0, 24], sizes = [8, 8], strides = [1, 1]} : vector<8x64xf32> to vector<8x8xf32>
      %310 = arith.truncf %309 : vector<8x8xf32> to vector<8x8xbf16>
      %c3_175 = arith.constant 3 : index
      %c0_176 = arith.constant 0 : index
      %c0_177 = arith.constant 0 : index
      %311 = vector.load %arg22[%c3_175, %c0_176, %c0_177] : memref<4x8x8xbf16, #tpu.memory_space<vmem>>, vector<1x8x8xbf16>
      %312 = vector.shape_cast %311 : vector<1x8x8xbf16> to vector<8x8xbf16>
      %313 = vector.shape_cast %310 : vector<8x8xbf16> to vector<1x8x8xbf16>
      tpu.vector_store %arg22[%c3_175, %c0_176, %c0_177], %313 {strides = array<i32>} : memref<4x8x8xbf16, #tpu.memory_space<vmem>>, vector<1x8x8xbf16>,
      %314 = vector.extract_strided_slice %246 {offsets = [0, 56], sizes = [8, 8], strides = [1, 1]} : vector<8x64xf32> to vector<8x8xf32>
      %315 = arith.truncf %314 : vector<8x8xf32> to vector<8x8xbf16>
      %c3_178 = arith.constant 3 : index
      %c0_179 = arith.constant 0 : index
      %c0_180 = arith.constant 0 : index
      %316 = vector.load %arg23[%c3_178, %c0_179, %c0_180] : memref<4x8x8xbf16, #tpu.memory_space<vmem>>, vector<1x8x8xbf16>
      %317 = vector.shape_cast %316 : vector<1x8x8xbf16> to vector<8x8xbf16>
      %318 = vector.shape_cast %315 : vector<8x8xbf16> to vector<1x8x8xbf16>
      tpu.vector_store %arg23[%c3_178, %c0_179, %c0_180], %318 {strides = array<i32>} : memref<4x8x8xbf16, #tpu.memory_space<vmem>>, vector<1x8x8xbf16>,
      %319 = vector.extract_strided_slice %248 {offsets = [0, 24], sizes = [8, 8], strides = [1, 1]} : vector<8x64xf32> to vector<8x8xf32>
      %320 = arith.truncf %319 : vector<8x8xf32> to vector<8x8xbf16>
      %c3_181 = arith.constant 3 : index
      %c0_182 = arith.constant 0 : index
      %c0_183 = arith.constant 0 : index
      %321 = vector.load %arg24[%c3_181, %c0_182, %c0_183] : memref<4x8x8xbf16, #tpu.memory_space<vmem>>, vector<1x8x8xbf16>
      %322 = vector.shape_cast %321 : vector<1x8x8xbf16> to vector<8x8xbf16>
      %323 = vector.shape_cast %320 : vector<8x8xbf16> to vector<1x8x8xbf16>
      tpu.vector_store %arg24[%c3_181, %c0_182, %c0_183], %323 {strides = array<i32>} : memref<4x8x8xbf16, #tpu.memory_space<vmem>>, vector<1x8x8xbf16>,
      %324 = vector.extract_strided_slice %248 {offsets = [0, 56], sizes = [8, 8], strides = [1, 1]} : vector<8x64xf32> to vector<8x8xf32>
      %325 = arith.truncf %324 : vector<8x8xf32> to vector<8x8xbf16>
      %c3_184 = arith.constant 3 : index
      %c0_185 = arith.constant 0 : index
      %c0_186 = arith.constant 0 : index
      %326 = vector.load %arg25[%c3_184, %c0_185, %c0_186] : memref<4x8x8xbf16, #tpu.memory_space<vmem>>, vector<1x8x8xbf16>
      %327 = vector.shape_cast %326 : vector<1x8x8xbf16> to vector<8x8xbf16>
      %328 = vector.shape_cast %325 : vector<8x8xbf16> to vector<1x8x8xbf16>
      tpu.vector_store %arg25[%c3_184, %c0_185, %c0_186], %328 {strides = array<i32>} : memref<4x8x8xbf16, #tpu.memory_space<vmem>>, vector<1x8x8xbf16>,
    } else {
    }
    %5 = arith.truncf %1 : vector<8x32xf32> to vector<8x32xbf16>
    %c0_3 = arith.constant 0 : index
    %c0_4 = arith.constant 0 : index
    %6 = vector.load %arg5[%c0_3, %c0_4] : memref<32x32xbf16, #tpu.memory_space<vmem>>, vector<32x32xbf16>
    %cst = arith.constant dense<0.000000e+00> : vector<8x32xf32>
    %7 = tpu.matmul %5, %6, %cst {dimension_numbers = #tpu.dot_dimension_numbers<[1], [0], [0], [1], [0, 0, 1, 1], [], []>} : vector<8x32xbf16>, vector<32x32xbf16>, vector<8x32xf32> -> vector<8x32xf32>
    %c0_5 = arith.constant 0 : index
    %c0_6 = arith.constant 0 : index
    %8 = vector.load %arg6[%c0_5, %c0_6] : memref<1x32xf32, #tpu.memory_space<vmem>>, vector<1x32xf32>
    %9 = vector.broadcast %8 : vector<1x32xf32> to vector<8x32xf32>
    %10 = arith.addf %7, %9 : vector<8x32xf32>
    %11 = vector.extract_strided_slice %10 {offsets = [0, 0], sizes = [8, 8], strides = [1, 1]} : vector<8x32xf32> to vector<8x8xf32>
    %12 = arith.truncf %11 : vector<8x8xf32> to vector<8x8xbf16>
    %c0_7 = arith.constant 0 : index
    %c0_8 = arith.constant 0 : index
    %c0_9 = arith.constant 0 : index
    %13 = vector.load %arg21[%c0_7, %c0_8, %c0_9] : memref<4x8x8xbf16, #tpu.memory_space<vmem>>, vector<1x8x8xbf16>
    %14 = vector.shape_cast %13 : vector<1x8x8xbf16> to vector<8x8xbf16>
    %15 = vector.shape_cast %12 : vector<8x8xbf16> to vector<1x8x8xbf16>
    tpu.vector_store %arg21[%c0_7, %c0_8, %c0_9], %15 {strides = array<i32>} : memref<4x8x8xbf16, #tpu.memory_space<vmem>>, vector<1x8x8xbf16>,
    %16 = vector.extract_strided_slice %10 {offsets = [0, 8], sizes = [8, 8], strides = [1, 1]} : vector<8x32xf32> to vector<8x8xf32>
    %17 = arith.truncf %16 : vector<8x8xf32> to vector<8x8xbf16>
    %c1 = arith.constant 1 : index
    %c0_10 = arith.constant 0 : index
    %c0_11 = arith.constant 0 : index
    %18 = vector.load %arg21[%c1, %c0_10, %c0_11] : memref<4x8x8xbf16, #tpu.memory_space<vmem>>, vector<1x8x8xbf16>
    %19 = vector.shape_cast %18 : vector<1x8x8xbf16> to vector<8x8xbf16>
    %20 = vector.shape_cast %17 : vector<8x8xbf16> to vector<1x8x8xbf16>
    tpu.vector_store %arg21[%c1, %c0_10, %c0_11], %20 {strides = array<i32>} : memref<4x8x8xbf16, #tpu.memory_space<vmem>>, vector<1x8x8xbf16>,
    %21 = vector.extract_strided_slice %10 {offsets = [0, 16], sizes = [8, 8], strides = [1, 1]} : vector<8x32xf32> to vector<8x8xf32>
    %22 = arith.truncf %21 : vector<8x8xf32> to vector<8x8xbf16>
    %c2 = arith.constant 2 : index
    %c0_12 = arith.constant 0 : index
    %c0_13 = arith.constant 0 : index
    %23 = vector.load %arg21[%c2, %c0_12, %c0_13] : memref<4x8x8xbf16, #tpu.memory_space<vmem>>, vector<1x8x8xbf16>
    %24 = vector.shape_cast %23 : vector<1x8x8xbf16> to vector<8x8xbf16>
    %25 = vector.shape_cast %22 : vector<8x8xbf16> to vector<1x8x8xbf16>
    tpu.vector_store %arg21[%c2, %c0_12, %c0_13], %25 {strides = array<i32>} : memref<4x8x8xbf16, #tpu.memory_space<vmem>>, vector<1x8x8xbf16>,
    %26 = vector.extract_strided_slice %10 {offsets = [0, 24], sizes = [8, 8], strides = [1, 1]} : vector<8x32xf32> to vector<8x8xf32>
    %27 = arith.truncf %26 : vector<8x8xf32> to vector<8x8xbf16>
    %c3 = arith.constant 3 : index
    %c0_14 = arith.constant 0 : index
    %c0_15 = arith.constant 0 : index
    %28 = vector.load %arg21[%c3, %c0_14, %c0_15] : memref<4x8x8xbf16, #tpu.memory_space<vmem>>, vector<1x8x8xbf16>
    %29 = vector.shape_cast %28 : vector<1x8x8xbf16> to vector<8x8xbf16>
    %30 = vector.shape_cast %27 : vector<8x8xbf16> to vector<1x8x8xbf16>
    tpu.vector_store %arg21[%c3, %c0_14, %c0_15], %30 {strides = array<i32>} : memref<4x8x8xbf16, #tpu.memory_space<vmem>>, vector<1x8x8xbf16>,
    %c0_16 = arith.constant 0 : index
    %c0_17 = arith.constant 0 : index
    %c0_18 = arith.constant 0 : index
    %31 = vector.load %arg21[%c0_16, %c0_17, %c0_18] : memref<4x8x8xbf16, #tpu.memory_space<vmem>>, vector<4x8x8xbf16>
    %c0_19 = arith.constant 0 : index
    %c0_20 = arith.constant 0 : index
    %c0_21 = arith.constant 0 : index
    %32 = vector.load %arg22[%c0_19, %c0_20, %c0_21] : memref<4x8x8xbf16, #tpu.memory_space<vmem>>, vector<4x8x8xbf16>
    "tpu.trace_start"() <{level = 10 : i32, message = "hqd,hkd->hqk"}> : () -> ()
    %cst_22 = arith.constant dense<0.000000e+00> : vector<4x8x8xf32>
    %33 = tpu.matmul %31, %32, %cst_22 {dimension_numbers = #tpu.dot_dimension_numbers<[2], [2], [1], [1], [0, 0, 0, 1, 1, 1], [0], [0]>} : vector<4x8x8xbf16>, vector<4x8x8xbf16>, vector<4x8x8xf32> -> vector<4x8x8xf32>
    "tpu.trace_stop"() : () -> ()
    %cst_23 = arith.constant 0.353553385 : f32
    %34 = vector.broadcast %cst_23 : f32 to vector<4x8x8xf32>
    %35 = arith.mulf %33, %34 : vector<4x8x8xf32>
    %cst_24 = arith.constant dense<0xFF800000> : vector<4x8xf32>
    %36 = vector.multi_reduction <maximumf>, %35, %cst_24 [2] : vector<4x8x8xf32> to vector<4x8xf32>
    %37 = vector.shape_cast %36 : vector<4x8xf32> to vector<4x8x1xf32>
    %38 = vector.broadcast %37 : vector<4x8x1xf32> to vector<4x8x8xf32>
    %39 = arith.subf %35, %38 : vector<4x8x8xf32>
    %40 = math.exp %39 : vector<4x8x8xf32>
    %cst_25 = arith.constant dense<0.000000e+00> : vector<4x8xf32>
    %41 = vector.multi_reduction <add>, %40, %cst_25 [2] : vector<4x8x8xf32> to vector<4x8xf32>
    %42 = vector.shape_cast %41 : vector<4x8xf32> to vector<4x8x1xf32>
    %43 = tpu.reciprocal %42 {approx = true} : vector<4x8x1xf32> -> vector<4x8x1xf32>
    %44 = vector.broadcast %43 : vector<4x8x1xf32> to vector<4x8x8xf32>
    %45 = arith.mulf %40, %44 : vector<4x8x8xf32>
    %46 = arith.truncf %45 : vector<4x8x8xf32> to vector<4x8x8xbf16>
    %c0_26 = arith.constant 0 : index
    %c0_27 = arith.constant 0 : index
    %c0_28 = arith.constant 0 : index
    %47 = vector.load %arg23[%c0_26, %c0_27, %c0_28] : memref<4x8x8xbf16, #tpu.memory_space<vmem>>, vector<4x8x8xbf16>
    "tpu.trace_start"() <{level = 10 : i32, message = "hqk,hkd->hqd"}> : () -> ()
    %cst_29 = arith.constant dense<0.000000e+00> : vector<4x8x8xf32>
    %48 = tpu.matmul %46, %47, %cst_29 {dimension_numbers = #tpu.dot_dimension_numbers<[2], [1], [1], [2], [0, 0, 0, 1, 1, 2], [0], [0]>} : vector<4x8x8xbf16>, vector<4x8x8xbf16>, vector<4x8x8xf32> -> vector<4x8x8xf32>
    "tpu.trace_stop"() : () -> ()
    %49 = vector.extract_strided_slice %48 {offsets = [0, 0, 0], sizes = [1, 8, 8], strides = [1, 1, 1]} : vector<4x8x8xf32> to vector<1x8x8xf32>
    %50 = vector.shape_cast %49 : vector<1x8x8xf32> to vector<8x8xf32>
    %51 = arith.truncf %50 : vector<8x8xf32> to vector<8x8xbf16>
    %c0_30 = arith.constant 0 : index
    %c0_31 = arith.constant 0 : index
    %52 = vector.load %arg26[%c0_30, %c0_31] : memref<8x32xbf16, #tpu.memory_space<vmem>>, vector<8x8xbf16>
    tpu.vector_store %arg26[%c0_30, %c0_31], %51 {strides = array<i32>} : memref<8x32xbf16, #tpu.memory_space<vmem>>, vector<8x8xbf16>,
    %53 = vector.extract_strided_slice %48 {offsets = [1, 0, 0], sizes = [1, 8, 8], strides = [1, 1, 1]} : vector<4x8x8xf32> to vector<1x8x8xf32>
    %54 = vector.shape_cast %53 : vector<1x8x8xf32> to vector<8x8xf32>
    %55 = arith.truncf %54 : vector<8x8xf32> to vector<8x8xbf16>
    %c0_32 = arith.constant 0 : index
    %c8 = arith.constant 8 : index
    %56 = vector.load %arg26[%c0_32, %c8] : memref<8x32xbf16, #tpu.memory_space<vmem>>, vector<8x8xbf16>
    tpu.vector_store %arg26[%c0_32, %c8], %55 {strides = array<i32>} : memref<8x32xbf16, #tpu.memory_space<vmem>>, vector<8x8xbf16>,
    %57 = vector.extract_strided_slice %48 {offsets = [2, 0, 0], sizes = [1, 8, 8], strides = [1, 1, 1]} : vector<4x8x8xf32> to vector<1x8x8xf32>
    %58 = vector.shape_cast %57 : vector<1x8x8xf32> to vector<8x8xf32>
    %59 = arith.truncf %58 : vector<8x8xf32> to vector<8x8xbf16>
    %c0_33 = arith.constant 0 : index
    %c16 = arith.constant 16 : index
    %60 = vector.load %arg26[%c0_33, %c16] : memref<8x32xbf16, #tpu.memory_space<vmem>>, vector<8x8xbf16>
    tpu.vector_store %arg26[%c0_33, %c16], %59 {strides = array<i32>} : memref<8x32xbf16, #tpu.memory_space<vmem>>, vector<8x8xbf16>,
    %61 = vector.extract_strided_slice %48 {offsets = [3, 0, 0], sizes = [1, 8, 8], strides = [1, 1, 1]} : vector<4x8x8xf32> to vector<1x8x8xf32>
    %62 = vector.shape_cast %61 : vector<1x8x8xf32> to vector<8x8xf32>
    %63 = arith.truncf %62 : vector<8x8xf32> to vector<8x8xbf16>
    %c0_34 = arith.constant 0 : index
    %c24 = arith.constant 24 : index
    %64 = vector.load %arg26[%c0_34, %c24] : memref<8x32xbf16, #tpu.memory_space<vmem>>, vector<8x8xbf16>
    tpu.vector_store %arg26[%c0_34, %c24], %63 {strides = array<i32>} : memref<8x32xbf16, #tpu.memory_space<vmem>>, vector<8x8xbf16>,
    %c0_35 = arith.constant 0 : index
    %c0_36 = arith.constant 0 : index
    %65 = vector.load %arg26[%c0_35, %c0_36] : memref<8x32xbf16, #tpu.memory_space<vmem>>, vector<8x32xbf16>
    %c0_37 = arith.constant 0 : index
    %c0_38 = arith.constant 0 : index
    %66 = vector.load %arg9[%c0_37, %c0_38] : memref<32x32xbf16, #tpu.memory_space<vmem>>, vector<32x32xbf16>
    %cst_39 = arith.constant dense<0.000000e+00> : vector<8x32xf32>
    %67 = tpu.matmul %65, %66, %cst_39 {dimension_numbers = #tpu.dot_dimension_numbers<[1], [0], [0], [1], [0, 0, 1, 1], [], []>} : vector<8x32xbf16>, vector<32x32xbf16>, vector<8x32xf32> -> vector<8x32xf32>
    %c0_40 = arith.constant 0 : index
    %c0_41 = arith.constant 0 : index
    %68 = vector.load %arg10[%c0_40, %c0_41] : memref<1x32xf32, #tpu.memory_space<vmem>>, vector<1x32xf32>
    %69 = vector.broadcast %68 : vector<1x32xf32> to vector<8x32xf32>
    %70 = arith.addf %67, %69 : vector<8x32xf32>
    %71 = arith.addf %1, %70 : vector<8x32xf32>
    %c0_42 = arith.constant 0 : index
    %c0_43 = arith.constant 0 : index
    %72 = vector.load %arg19[%c0_42, %c0_43] : memref<6x32xf32, #tpu.memory_space<vmem>>, vector<1x32xf32>
    %73 = vector.shape_cast %72 : vector<1x32xf32> to vector<32xf32>
    %c1_44 = arith.constant 1 : index
    %c0_45 = arith.constant 0 : index
    %74 = vector.load %arg19[%c1_44, %c0_45] : memref<6x32xf32, #tpu.memory_space<vmem>>, vector<1x32xf32>
    %75 = vector.shape_cast %74 : vector<1x32xf32> to vector<32xf32>
    %cst_46 = arith.constant dense<0.000000e+00> : vector<8xf32>
    %76 = vector.multi_reduction <add>, %71, %cst_46 [1] : vector<8x32xf32> to vector<8xf32>
    %77 = vector.shape_cast %76 : vector<8xf32> to vector<8x1xf32>
    %cst_47 = arith.constant 3.200000e+01 : f32
    %78 = vector.broadcast %cst_47 : f32 to vector<8x1xf32>
    %79 = arith.divf %77, %78 : vector<8x1xf32>
    %80 = arith.mulf %71, %71 : vector<8x32xf32>
    %cst_48 = arith.constant dense<0.000000e+00> : vector<8xf32>
    %81 = vector.multi_reduction <add>, %80, %cst_48 [1] : vector<8x32xf32> to vector<8xf32>
    %82 = vector.shape_cast %81 : vector<8xf32> to vector<8x1xf32>
    %cst_49 = arith.constant 3.200000e+01 : f32
    %83 = vector.broadcast %cst_49 : f32 to vector<8x1xf32>
    %84 = arith.divf %82, %83 : vector<8x1xf32>
    %85 = arith.mulf %79, %79 : vector<8x1xf32>
    %86 = arith.subf %84, %85 : vector<8x1xf32>
    %87 = vector.broadcast %79 : vector<8x1xf32> to vector<8x32xf32>
    %88 = arith.subf %71, %87 : vector<8x32xf32>
    %cst_50 = arith.constant 9.99999974E-6 : f32
    %89 = vector.broadcast %cst_50 : f32 to vector<8x1xf32>
    %90 = arith.addf %86, %89 : vector<8x1xf32>
    %91 = math.rsqrt %90 : vector<8x1xf32>
    %92 = vector.broadcast %91 : vector<8x1xf32> to vector<8x32xf32>
    %93 = arith.mulf %88, %92 : vector<8x32xf32>
    %94 = vector.shape_cast %73 : vector<32xf32> to vector<1x32xf32>
    %95 = vector.broadcast %94 : vector<1x32xf32> to vector<8x32xf32>
    %96 = arith.mulf %93, %95 : vector<8x32xf32>
    %97 = vector.shape_cast %75 : vector<32xf32> to vector<1x32xf32>
    %98 = vector.broadcast %97 : vector<1x32xf32> to vector<8x32xf32>
    %99 = arith.addf %96, %98 : vector<8x32xf32>
    %100 = arith.truncf %99 : vector<8x32xf32> to vector<8x32xbf16>
    %c0_51 = arith.constant 0 : index
    %c0_52 = arith.constant 0 : index
    %101 = vector.load %arg11[%c0_51, %c0_52] : memref<32x32xbf16, #tpu.memory_space<vmem>>, vector<32x32xbf16>
    %cst_53 = arith.constant dense<0.000000e+00> : vector<8x32xf32>
    %102 = tpu.matmul %100, %101, %cst_53 {dimension_numbers = #tpu.dot_dimension_numbers<[1], [0], [0], [1], [0, 0, 1, 1], [], []>} : vector<8x32xbf16>, vector<32x32xbf16>, vector<8x32xf32> -> vector<8x32xf32>
    %103 = vector.extract_strided_slice %102 {offsets = [0, 0], sizes = [8, 8], strides = [1, 1]} : vector<8x32xf32> to vector<8x8xf32>
    %104 = arith.truncf %103 : vector<8x8xf32> to vector<8x8xbf16>
    %c0_54 = arith.constant 0 : index
    %c0_55 = arith.constant 0 : index
    %c0_56 = arith.constant 0 : index
    %105 = vector.load %arg21[%c0_54, %c0_55, %c0_56] : memref<4x8x8xbf16, #tpu.memory_space<vmem>>, vector<1x8x8xbf16>
    %106 = vector.shape_cast %105 : vector<1x8x8xbf16> to vector<8x8xbf16>
    %107 = vector.shape_cast %104 : vector<8x8xbf16> to vector<1x8x8xbf16>
    tpu.vector_store %arg21[%c0_54, %c0_55, %c0_56], %107 {strides = array<i32>} : memref<4x8x8xbf16, #tpu.memory_space<vmem>>, vector<1x8x8xbf16>,
    %108 = vector.extract_strided_slice %102 {offsets = [0, 8], sizes = [8, 8], strides = [1, 1]} : vector<8x32xf32> to vector<8x8xf32>
    %109 = arith.truncf %108 : vector<8x8xf32> to vector<8x8xbf16>
    %c1_57 = arith.constant 1 : index
    %c0_58 = arith.constant 0 : index
    %c0_59 = arith.constant 0 : index
    %110 = vector.load %arg21[%c1_57, %c0_58, %c0_59] : memref<4x8x8xbf16, #tpu.memory_space<vmem>>, vector<1x8x8xbf16>
    %111 = vector.shape_cast %110 : vector<1x8x8xbf16> to vector<8x8xbf16>
    %112 = vector.shape_cast %109 : vector<8x8xbf16> to vector<1x8x8xbf16>
    tpu.vector_store %arg21[%c1_57, %c0_58, %c0_59], %112 {strides = array<i32>} : memref<4x8x8xbf16, #tpu.memory_space<vmem>>, vector<1x8x8xbf16>,
    %113 = vector.extract_strided_slice %102 {offsets = [0, 16], sizes = [8, 8], strides = [1, 1]} : vector<8x32xf32> to vector<8x8xf32>
    %114 = arith.truncf %113 : vector<8x8xf32> to vector<8x8xbf16>
    %c2_60 = arith.constant 2 : index
    %c0_61 = arith.constant 0 : index
    %c0_62 = arith.constant 0 : index
    %115 = vector.load %arg21[%c2_60, %c0_61, %c0_62] : memref<4x8x8xbf16, #tpu.memory_space<vmem>>, vector<1x8x8xbf16>
    %116 = vector.shape_cast %115 : vector<1x8x8xbf16> to vector<8x8xbf16>
    %117 = vector.shape_cast %114 : vector<8x8xbf16> to vector<1x8x8xbf16>
    tpu.vector_store %arg21[%c2_60, %c0_61, %c0_62], %117 {strides = array<i32>} : memref<4x8x8xbf16, #tpu.memory_space<vmem>>, vector<1x8x8xbf16>,
    %118 = vector.extract_strided_slice %102 {offsets = [0, 24], sizes = [8, 8], strides = [1, 1]} : vector<8x32xf32> to vector<8x8xf32>
    %119 = arith.truncf %118 : vector<8x8xf32> to vector<8x8xbf16>
    %c3_63 = arith.constant 3 : index
    %c0_64 = arith.constant 0 : index
    %c0_65 = arith.constant 0 : index
    %120 = vector.load %arg21[%c3_63, %c0_64, %c0_65] : memref<4x8x8xbf16, #tpu.memory_space<vmem>>, vector<1x8x8xbf16>
    %121 = vector.shape_cast %120 : vector<1x8x8xbf16> to vector<8x8xbf16>
    %122 = vector.shape_cast %119 : vector<8x8xbf16> to vector<1x8x8xbf16>
    tpu.vector_store %arg21[%c3_63, %c0_64, %c0_65], %122 {strides = array<i32>} : memref<4x8x8xbf16, #tpu.memory_space<vmem>>, vector<1x8x8xbf16>,
    %c0_66 = arith.constant 0 : index
    %c0_67 = arith.constant 0 : index
    %c0_68 = arith.constant 0 : index
    %123 = vector.load %arg21[%c0_66, %c0_67, %c0_68] : memref<4x8x8xbf16, #tpu.memory_space<vmem>>, vector<4x8x8xbf16>
    %c0_69 = arith.constant 0 : index
    %c0_70 = arith.constant 0 : index
    %c0_71 = arith.constant 0 : index
    %124 = vector.load %arg24[%c0_69, %c0_70, %c0_71] : memref<4x8x8xbf16, #tpu.memory_space<vmem>>, vector<4x8x8xbf16>
    "tpu.trace_start"() <{level = 10 : i32, message = "hqd,hsd->hqs"}> : () -> ()
    %cst_72 = arith.constant dense<0.000000e+00> : vector<4x8x8xf32>
    %125 = tpu.matmul %123, %124, %cst_72 {dimension_numbers = #tpu.dot_dimension_numbers<[2], [2], [1], [1], [0, 0, 0, 1, 1, 1], [0], [0]>} : vector<4x8x8xbf16>, vector<4x8x8xbf16>, vector<4x8x8xf32> -> vector<4x8x8xf32>
    "tpu.trace_stop"() : () -> ()
    %cst_73 = arith.constant 0.353553385 : f32
    %126 = vector.broadcast %cst_73 : f32 to vector<4x8x8xf32>
    %127 = arith.mulf %125, %126 : vector<4x8x8xf32>
    %cst_74 = arith.constant dense<0xFF800000> : vector<8x8xf32>
    %128 = vector.multi_reduction <maximumf>, %127, %cst_74 [0] : vector<4x8x8xf32> to vector<8x8xf32>
    %129 = vector.shape_cast %128 : vector<8x8xf32> to vector<1x8x8xf32>
    %130 = vector.broadcast %129 : vector<1x8x8xf32> to vector<4x8x8xf32>
    %131 = arith.subf %127, %130 : vector<4x8x8xf32>
    %132 = math.exp %131 : vector<4x8x8xf32>
    %cst_75 = arith.constant dense<0.000000e+00> : vector<8x8xf32>
    %133 = vector.multi_reduction <add>, %132, %cst_75 [0] : vector<4x8x8xf32> to vector<8x8xf32>
    %134 = vector.shape_cast %133 : vector<8x8xf32> to vector<1x8x8xf32>
    %135 = tpu.reciprocal %134 {approx = true} : vector<1x8x8xf32> -> vector<1x8x8xf32>
    %136 = vector.broadcast %135 : vector<1x8x8xf32> to vector<4x8x8xf32>
    %137 = arith.mulf %132, %136 : vector<4x8x8xf32>
    %138 = arith.truncf %137 : vector<4x8x8xf32> to vector<4x8x8xbf16>
    %c0_76 = arith.constant 0 : index
    %c0_77 = arith.constant 0 : index
    %c0_78 = arith.constant 0 : index
    %139 = vector.load %arg25[%c0_76, %c0_77, %c0_78] : memref<4x8x8xbf16, #tpu.memory_space<vmem>>, vector<4x8x8xbf16>
    "tpu.trace_start"() <{level = 10 : i32, message = "hqs,hsd->hqd"}> : () -> ()
    %cst_79 = arith.constant dense<0.000000e+00> : vector<4x8x8xf32>
    %140 = tpu.matmul %138, %139, %cst_79 {dimension_numbers = #tpu.dot_dimension_numbers<[2], [1], [1], [2], [0, 0, 0, 1, 1, 2], [0], [0]>} : vector<4x8x8xbf16>, vector<4x8x8xbf16>, vector<4x8x8xf32> -> vector<4x8x8xf32>
    "tpu.trace_stop"() : () -> ()
    %141 = vector.extract_strided_slice %140 {offsets = [0, 0, 0], sizes = [1, 8, 8], strides = [1, 1, 1]} : vector<4x8x8xf32> to vector<1x8x8xf32>
    %142 = vector.shape_cast %141 : vector<1x8x8xf32> to vector<8x8xf32>
    %143 = arith.truncf %142 : vector<8x8xf32> to vector<8x8xbf16>
    %c0_80 = arith.constant 0 : index
    %c0_81 = arith.constant 0 : index
    %144 = vector.load %arg26[%c0_80, %c0_81] : memref<8x32xbf16, #tpu.memory_space<vmem>>, vector<8x8xbf16>
    tpu.vector_store %arg26[%c0_80, %c0_81], %143 {strides = array<i32>} : memref<8x32xbf16, #tpu.memory_space<vmem>>, vector<8x8xbf16>,
    %145 = vector.extract_strided_slice %140 {offsets = [1, 0, 0], sizes = [1, 8, 8], strides = [1, 1, 1]} : vector<4x8x8xf32> to vector<1x8x8xf32>
    %146 = vector.shape_cast %145 : vector<1x8x8xf32> to vector<8x8xf32>
    %147 = arith.truncf %146 : vector<8x8xf32> to vector<8x8xbf16>
    %c0_82 = arith.constant 0 : index
    %c8_83 = arith.constant 8 : index
    %148 = vector.load %arg26[%c0_82, %c8_83] : memref<8x32xbf16, #tpu.memory_space<vmem>>, vector<8x8xbf16>
    tpu.vector_store %arg26[%c0_82, %c8_83], %147 {strides = array<i32>} : memref<8x32xbf16, #tpu.memory_space<vmem>>, vector<8x8xbf16>,
    %149 = vector.extract_strided_slice %140 {offsets = [2, 0, 0], sizes = [1, 8, 8], strides = [1, 1, 1]} : vector<4x8x8xf32> to vector<1x8x8xf32>
    %150 = vector.shape_cast %149 : vector<1x8x8xf32> to vector<8x8xf32>
    %151 = arith.truncf %150 : vector<8x8xf32> to vector<8x8xbf16>
    %c0_84 = arith.constant 0 : index
    %c16_85 = arith.constant 16 : index
    %152 = vector.load %arg26[%c0_84, %c16_85] : memref<8x32xbf16, #tpu.memory_space<vmem>>, vector<8x8xbf16>
    tpu.vector_store %arg26[%c0_84, %c16_85], %151 {strides = array<i32>} : memref<8x32xbf16, #tpu.memory_space<vmem>>, vector<8x8xbf16>,
    %153 = vector.extract_strided_slice %140 {offsets = [3, 0, 0], sizes = [1, 8, 8], strides = [1, 1, 1]} : vector<4x8x8xf32> to vector<1x8x8xf32>
    %154 = vector.shape_cast %153 : vector<1x8x8xf32> to vector<8x8xf32>
    %155 = arith.truncf %154 : vector<8x8xf32> to vector<8x8xbf16>
    %c0_86 = arith.constant 0 : index
    %c24_87 = arith.constant 24 : index
    %156 = vector.load %arg26[%c0_86, %c24_87] : memref<8x32xbf16, #tpu.memory_space<vmem>>, vector<8x8xbf16>
    tpu.vector_store %arg26[%c0_86, %c24_87], %155 {strides = array<i32>} : memref<8x32xbf16, #tpu.memory_space<vmem>>, vector<8x8xbf16>,
    %c0_88 = arith.constant 0 : index
    %c0_89 = arith.constant 0 : index
    %157 = vector.load %arg26[%c0_88, %c0_89] : memref<8x32xbf16, #tpu.memory_space<vmem>>, vector<8x32xbf16>
    %c0_90 = arith.constant 0 : index
    %c0_91 = arith.constant 0 : index
    %158 = vector.load %arg13[%c0_90, %c0_91] : memref<32x32xbf16, #tpu.memory_space<vmem>>, vector<32x32xbf16>
    %cst_92 = arith.constant dense<0.000000e+00> : vector<8x32xf32>
    %159 = tpu.matmul %157, %158, %cst_92 {dimension_numbers = #tpu.dot_dimension_numbers<[1], [0], [0], [1], [0, 0, 1, 1], [], []>} : vector<8x32xbf16>, vector<32x32xbf16>, vector<8x32xf32> -> vector<8x32xf32>
    %c0_93 = arith.constant 0 : index
    %c0_94 = arith.constant 0 : index
    %160 = vector.load %arg14[%c0_93, %c0_94] : memref<1x32xf32, #tpu.memory_space<vmem>>, vector<1x32xf32>
    %161 = vector.broadcast %160 : vector<1x32xf32> to vector<8x32xf32>
    %162 = arith.addf %159, %161 : vector<8x32xf32>
    %163 = arith.addf %99, %162 : vector<8x32xf32>
    %c2_95 = arith.constant 2 : index
    %c0_96 = arith.constant 0 : index
    %164 = vector.load %arg19[%c2_95, %c0_96] : memref<6x32xf32, #tpu.memory_space<vmem>>, vector<1x32xf32>
    %165 = vector.shape_cast %164 : vector<1x32xf32> to vector<32xf32>
    %c3_97 = arith.constant 3 : index
    %c0_98 = arith.constant 0 : index
    %166 = vector.load %arg19[%c3_97, %c0_98] : memref<6x32xf32, #tpu.memory_space<vmem>>, vector<1x32xf32>
    %167 = vector.shape_cast %166 : vector<1x32xf32> to vector<32xf32>
    %cst_99 = arith.constant dense<0.000000e+00> : vector<8xf32>
    %168 = vector.multi_reduction <add>, %163, %cst_99 [1] : vector<8x32xf32> to vector<8xf32>
    %169 = vector.shape_cast %168 : vector<8xf32> to vector<8x1xf32>
    %cst_100 = arith.constant 3.200000e+01 : f32
    %170 = vector.broadcast %cst_100 : f32 to vector<8x1xf32>
    %171 = arith.divf %169, %170 : vector<8x1xf32>
    %172 = arith.mulf %163, %163 : vector<8x32xf32>
    %cst_101 = arith.constant dense<0.000000e+00> : vector<8xf32>
    %173 = vector.multi_reduction <add>, %172, %cst_101 [1] : vector<8x32xf32> to vector<8xf32>
    %174 = vector.shape_cast %173 : vector<8xf32> to vector<8x1xf32>
    %cst_102 = arith.constant 3.200000e+01 : f32
    %175 = vector.broadcast %cst_102 : f32 to vector<8x1xf32>
    %176 = arith.divf %174, %175 : vector<8x1xf32>
    %177 = arith.mulf %171, %171 : vector<8x1xf32>
    %178 = arith.subf %176, %177 : vector<8x1xf32>
    %179 = vector.broadcast %171 : vector<8x1xf32> to vector<8x32xf32>
    %180 = arith.subf %163, %179 : vector<8x32xf32>
    %cst_103 = arith.constant 9.99999974E-6 : f32
    %181 = vector.broadcast %cst_103 : f32 to vector<8x1xf32>
    %182 = arith.addf %178, %181 : vector<8x1xf32>
    %183 = math.rsqrt %182 : vector<8x1xf32>
    %184 = vector.broadcast %183 : vector<8x1xf32> to vector<8x32xf32>
    %185 = arith.mulf %180, %184 : vector<8x32xf32>
    %186 = vector.shape_cast %165 : vector<32xf32> to vector<1x32xf32>
    %187 = vector.broadcast %186 : vector<1x32xf32> to vector<8x32xf32>
    %188 = arith.mulf %185, %187 : vector<8x32xf32>
    %189 = vector.shape_cast %167 : vector<32xf32> to vector<1x32xf32>
    %190 = vector.broadcast %189 : vector<1x32xf32> to vector<8x32xf32>
    %191 = arith.addf %188, %190 : vector<8x32xf32>
    %192 = arith.truncf %191 : vector<8x32xf32> to vector<8x32xbf16>
    %c0_104 = arith.constant 0 : index
    %c0_105 = arith.constant 0 : index
    %193 = vector.load %arg15[%c0_104, %c0_105] : memref<32x128xbf16, #tpu.memory_space<vmem>>, vector<32x128xbf16>
    %cst_106 = arith.constant dense<0.000000e+00> : vector<8x128xf32>
    %194 = tpu.matmul %192, %193, %cst_106 {dimension_numbers = #tpu.dot_dimension_numbers<[1], [0], [0], [1], [0, 0, 1, 1], [], []>} : vector<8x32xbf16>, vector<32x128xbf16>, vector<8x128xf32> -> vector<8x128xf32>
    %c0_107 = arith.constant 0 : index
    %c0_108 = arith.constant 0 : index
    %195 = vector.load %arg16[%c0_107, %c0_108] : memref<1x128xf32, #tpu.memory_space<vmem>>, vector<1x128xf32>
    %196 = vector.broadcast %195 : vector<1x128xf32> to vector<8x128xf32>
    %197 = arith.addf %194, %196 : vector<8x128xf32>
    %cst_109 = arith.constant 0.000000e+00 : f32
    %198 = vector.broadcast %cst_109 : f32 to vector<8x128xf32>
    %199 = arith.maximumf %197, %198 : vector<8x128xf32>
    %200 = arith.truncf %199 : vector<8x128xf32> to vector<8x128xbf16>
    %c0_110 = arith.constant 0 : index
    %c0_111 = arith.constant 0 : index
    %201 = vector.load %arg17[%c0_110, %c0_111] : memref<128x32xbf16, #tpu.memory_space<vmem>>, vector<128x32xbf16>
    %cst_112 = arith.constant dense<0.000000e+00> : vector<8x32xf32>
    %202 = tpu.matmul %200, %201, %cst_112 {dimension_numbers = #tpu.dot_dimension_numbers<[1], [0], [0], [1], [0, 0, 1, 1], [], []>} : vector<8x128xbf16>, vector<128x32xbf16>, vector<8x32xf32> -> vector<8x32xf32>
    %c0_113 = arith.constant 0 : index
    %c0_114 = arith.constant 0 : index
    %203 = vector.load %arg18[%c0_113, %c0_114] : memref<1x32xf32, #tpu.memory_space<vmem>>, vector<1x32xf32>
    %204 = vector.broadcast %203 : vector<1x32xf32> to vector<8x32xf32>
    %205 = arith.addf %202, %204 : vector<8x32xf32>
    %206 = arith.addf %191, %205 : vector<8x32xf32>
    %c4 = arith.constant 4 : index
    %c0_115 = arith.constant 0 : index
    %207 = vector.load %arg19[%c4, %c0_115] : memref<6x32xf32, #tpu.memory_space<vmem>>, vector<1x32xf32>
    %208 = vector.shape_cast %207 : vector<1x32xf32> to vector<32xf32>
    %c5 = arith.constant 5 : index
    %c0_116 = arith.constant 0 : index
    %209 = vector.load %arg19[%c5, %c0_116] : memref<6x32xf32, #tpu.memory_space<vmem>>, vector<1x32xf32>
    %210 = vector.shape_cast %209 : vector<1x32xf32> to vector<32xf32>
    %cst_117 = arith.constant dense<0.000000e+00> : vector<8xf32>
    %211 = vector.multi_reduction <add>, %206, %cst_117 [1] : vector<8x32xf32> to vector<8xf32>
    %212 = vector.shape_cast %211 : vector<8xf32> to vector<8x1xf32>
    %cst_118 = arith.constant 3.200000e+01 : f32
    %213 = vector.broadcast %cst_118 : f32 to vector<8x1xf32>
    %214 = arith.divf %212, %213 : vector<8x1xf32>
    %215 = arith.mulf %206, %206 : vector<8x32xf32>
    %cst_119 = arith.constant dense<0.000000e+00> : vector<8xf32>
    %216 = vector.multi_reduction <add>, %215, %cst_119 [1] : vector<8x32xf32> to vector<8xf32>
    %217 = vector.shape_cast %216 : vector<8xf32> to vector<8x1xf32>
    %cst_120 = arith.constant 3.200000e+01 : f32
    %218 = vector.broadcast %cst_120 : f32 to vector<8x1xf32>
    %219 = arith.divf %217, %218 : vector<8x1xf32>
    %220 = arith.mulf %214, %214 : vector<8x1xf32>
    %221 = arith.subf %219, %220 : vector<8x1xf32>
    %222 = vector.broadcast %214 : vector<8x1xf32> to vector<8x32xf32>
    %223 = arith.subf %206, %222 : vector<8x32xf32>
    %cst_121 = arith.constant 9.99999974E-6 : f32
    %224 = vector.broadcast %cst_121 : f32 to vector<8x1xf32>
    %225 = arith.addf %221, %224 : vector<8x1xf32>
    %226 = math.rsqrt %225 : vector<8x1xf32>
    %227 = vector.broadcast %226 : vector<8x1xf32> to vector<8x32xf32>
    %228 = arith.mulf %223, %227 : vector<8x32xf32>
    %229 = vector.shape_cast %208 : vector<32xf32> to vector<1x32xf32>
    %230 = vector.broadcast %229 : vector<1x32xf32> to vector<8x32xf32>
    %231 = arith.mulf %228, %230 : vector<8x32xf32>
    %232 = vector.shape_cast %210 : vector<32xf32> to vector<1x32xf32>
    %233 = vector.broadcast %232 : vector<1x32xf32> to vector<8x32xf32>
    %234 = arith.addf %231, %233 : vector<8x32xf32>
    %c0_122 = arith.constant 0 : index
    %c0_123 = arith.constant 0 : index
    %c0_124 = arith.constant 0 : index
    %235 = vector.load %arg20[%c0_122, %c0_123, %c0_124] : memref<1x8x32xf32, #tpu.memory_space<vmem>>, vector<1x8x32xf32>
    %236 = vector.shape_cast %235 : vector<1x8x32xf32> to vector<8x32xf32>
    %237 = vector.shape_cast %234 : vector<8x32xf32> to vector<1x8x32xf32>
    tpu.vector_store %arg20[%c0_122, %c0_123, %c0_124], %237 {strides = array<i32>} : memref<1x8x32xf32, #tpu.memory_space<vmem>>, vector<1x8x32xf32>,
    return
  }
  func.func @transform_0(%arg0: i32, %arg1: i32) -> (i32, i32, i32) {
    %c0_i32 = arith.constant 0 : i32
    %c0_i32_0 = arith.constant 0 : i32
    return %arg0, %arg1, %c0_i32 : i32, i32, i32
  }
  func.func @transform_1(%arg0: i32, %arg1: i32) -> (i32, i32, i32) {
    %c0_i32 = arith.constant 0 : i32
    %c0_i32_0 = arith.constant 0 : i32
    %c0_i32_1 = arith.constant 0 : i32
    return %arg0, %c0_i32, %c0_i32_0 : i32, i32, i32
  }
  func.func @transform_2(%arg0: i32, %arg1: i32) -> (i32, i32, i32) {
    %c0_i32 = arith.constant 0 : i32
    %c0_i32_0 = arith.constant 0 : i32
    %c0_i32_1 = arith.constant 0 : i32
    return %arg0, %c0_i32, %c0_i32_0 : i32, i32, i32
  }
  func.func @transform_3(%arg0: i32, %arg1: i32) -> (i32, i32) {
    %c0_i32 = arith.constant 0 : i32
    %c0_i32_0 = arith.constant 0 : i32
    %c0_i32_1 = arith.constant 0 : i32
    return %c0_i32, %c0_i32_0 : i32, i32
  }
  func.func @transform_4(%arg0: i32, %arg1: i32) -> (i32, i32) {
    %c0_i32 = arith.constant 0 : i32
    %c0_i32_0 = arith.constant 0 : i32
    %c0_i32_1 = arith.constant 0 : i32
    return %c0_i32, %c0_i32_0 : i32, i32
  }
  func.func @transform_5(%arg0: i32, %arg1: i32) -> (i32, i32) {
    %c0_i32 = arith.constant 0 : i32
    %c0_i32_0 = arith.constant 0 : i32
    %c0_i32_1 = arith.constant 0 : i32
    return %c0_i32, %c0_i32_0 : i32, i32
  }
  func.func @transform_6(%arg0: i32, %arg1: i32) -> (i32, i32) {
    %c0_i32 = arith.constant 0 : i32
    %c0_i32_0 = arith.constant 0 : i32
    %c0_i32_1 = arith.constant 0 : i32
    return %c0_i32, %c0_i32_0 : i32, i32
  }
  func.func @transform_7(%arg0: i32, %arg1: i32) -> (i32, i32) {
    %c0_i32 = arith.constant 0 : i32
    %c0_i32_0 = arith.constant 0 : i32
    %c0_i32_1 = arith.constant 0 : i32
    return %c0_i32, %c0_i32_0 : i32, i32
  }
  func.func @transform_8(%arg0: i32, %arg1: i32) -> (i32, i32) {
    %c0_i32 = arith.constant 0 : i32
    %c0_i32_0 = arith.constant 0 : i32
    %c0_i32_1 = arith.constant 0 : i32
    return %c0_i32, %c0_i32_0 : i32, i32
  }
  func.func @transform_9(%arg0: i32, %arg1: i32) -> (i32, i32) {
    %c0_i32 = arith.constant 0 : i32
    %c0_i32_0 = arith.constant 0 : i32
    %c0_i32_1 = arith.constant 0 : i32
    return %c0_i32, %c0_i32_0 : i32, i32
  }
  func.func @transform_10(%arg0: i32, %arg1: i32) -> (i32, i32) {
    %c0_i32 = arith.constant 0 : i32
    %c0_i32_0 = arith.constant 0 : i32
    %c0_i32_1 = arith.constant 0 : i32
    return %c0_i32, %c0_i32_0 : i32, i32
  }
  func.func @transform_11(%arg0: i32, %arg1: i32) -> (i32, i32) {
    %c0_i32 = arith.constant 0 : i32
    %c0_i32_0 = arith.constant 0 : i32
    %c0_i32_1 = arith.constant 0 : i32
    return %c0_i32, %c0_i32_0 : i32, i32
  }
  func.func @transform_12(%arg0: i32, %arg1: i32) -> (i32, i32) {
    %c0_i32 = arith.constant 0 : i32
    %c0_i32_0 = arith.constant 0 : i32
    %c0_i32_1 = arith.constant 0 : i32
    return %c0_i32, %c0_i32_0 : i32, i32
  }
  func.func @transform_13(%arg0: i32, %arg1: i32) -> (i32, i32) {
    %c0_i32 = arith.constant 0 : i32
    %c0_i32_0 = arith.constant 0 : i32
    %c0_i32_1 = arith.constant 0 : i32
    return %c0_i32, %c0_i32_0 : i32, i32
  }
  func.func @transform_14(%arg0: i32, %arg1: i32) -> (i32, i32) {
    %c0_i32 = arith.constant 0 : i32
    %c0_i32_0 = arith.constant 0 : i32
    %c0_i32_1 = arith.constant 0 : i32
    return %c0_i32, %c0_i32_0 : i32, i32
  }
  func.func @transform_15(%arg0: i32, %arg1: i32) -> (i32, i32) {
    %c0_i32 = arith.constant 0 : i32
    %c0_i32_0 = arith.constant 0 : i32
    %c0_i32_1 = arith.constant 0 : i32
    return %c0_i32, %c0_i32_0 : i32, i32
  }
  func.func @transform_16(%arg0: i32, %arg1: i32) -> (i32, i32) {
    %c0_i32 = arith.constant 0 : i32
    %c0_i32_0 = arith.constant 0 : i32
    %c0_i32_1 = arith.constant 0 : i32
    return %c0_i32, %c0_i32_0 : i32, i32
  }
  func.func @transform_17(%arg0: i32, %arg1: i32) -> (i32, i32) {
    %c0_i32 = arith.constant 0 : i32
    %c0_i32_0 = arith.constant 0 : i32
    %c0_i32_1 = arith.constant 0 : i32
    return %c0_i32, %c0_i32_0 : i32, i32
  }
  func.func @transform_18(%arg0: i32, %arg1: i32) -> (i32, i32, i32) {
    %c0_i32 = arith.constant 0 : i32
    %c0_i32_0 = arith.constant 0 : i32
    return %arg0, %arg1, %c0_i32 : i32, i32, i32
  }
}

</mosaic_0001>

<llo_original>
// kernel: tpu_custom_call.1
$region0: #{tpu_custom_call.1}
  #allocation0 [shape = 'u32[]', space=smem, size = 0x4, offset = 0x4, fixed_abs, tag = 'smem constant byte address 0x4 - core index']
  #allocation1 [shape = 'u32[72,128]{1,0:T(1,128)}', space=vmem, size = 0x9000, scoped, tag = 'internal scratch']
  #allocation2 [shape = 'bf16[4,8,8]{2,1,0:T(8,128)(2,1)}', space=vmem, size = 0x2000, scoped, tag = 'scratch operand']
  #allocation3 [shape = 'bf16[4,8,8]{2,1,0:T(8,128)(2,1)}', space=vmem, size = 0x2000, scoped, tag = 'scratch operand']
  #allocation4 [shape = 'bf16[4,8,8]{2,1,0:T(8,128)(2,1)}', space=vmem, size = 0x2000, scoped, tag = 'scratch operand']
  #allocation5 [shape = 'bf16[4,8,8]{2,1,0:T(8,128)(2,1)}', space=vmem, size = 0x2000, scoped, tag = 'scratch operand']
  #allocation6 [shape = 'bf16[4,8,8]{2,1,0:T(8,128)(2,1)}', space=vmem, size = 0x2000, scoped, tag = 'scratch operand']
  #allocation7 [shape = 'bf16[8,32]{1,0:T(8,128)(2,1)}', space=vmem, size = 0x800, scoped, tag = 'scratch operand']
  %s0 = inlined_call_operand.vmem [shape: f32[2,8,32], index: 0, kind: input, shape index: {}]
  %s1 = inlined_call_operand.hbm [shape: bf16[2,8,32], index: 1, kind: input, shape index: {}]
  %s2 = inlined_call_operand.hbm [shape: bf16[2,8,32], index: 2, kind: input, shape index: {}]
  %s3 = inlined_call_operand.vmem [shape: bf16[32,32], index: 3, kind: input, shape index: {}]
  %s4 = inlined_call_operand.vmem [shape: f32[1,32], index: 4, kind: input, shape index: {}]
  %s5 = inlined_call_operand.vmem [shape: bf16[32,64], index: 5, kind: input, shape index: {}]
  %s6 = inlined_call_operand.hbm [shape: f32[1,64], index: 6, kind: input, shape index: {}]
  %s7 = inlined_call_operand.vmem [shape: bf16[32,32], index: 7, kind: input, shape index: {}]
  %s8 = inlined_call_operand.hbm [shape: f32[1,32], index: 8, kind: input, shape index: {}]
  %s9 = inlined_call_operand.vmem [shape: bf16[32,32], index: 9, kind: input, shape index: {}]
  %s10 = inlined_call_operand.hbm [shape: bf16[32,64], index: 10, kind: input, shape index: {}]
  %s11 = inlined_call_operand.hbm [shape: bf16[32,32], index: 11, kind: input, shape index: {}]
  %s12 = inlined_call_operand.vmem [shape: f32[1,32], index: 12, kind: input, shape index: {}]
  %s13 = inlined_call_operand.hbm [shape: bf16[32,128], index: 13, kind: input, shape index: {}]
  %s14 = inlined_call_operand.vmem [shape: f32[1,128], index: 14, kind: input, shape index: {}]
  %s15 = inlined_call_operand.vmem [shape: bf16[128,32], index: 15, kind: input, shape index: {}]
  %s16 = inlined_call_operand.vmem [shape: f32[1,32], index: 16, kind: input, shape index: {}]
  %s17 = inlined_call_operand.vmem [shape: f32[6,32], index: 17, kind: input, shape index: {}]
  %s18 = inlined_call_operand.hbm [shape: f32[2,8,32], index: 18, kind: output, shape index: {}]
  %s19 = sld [smem:[#allocation0]]
  $region137: #{tpu_custom_call.1} parent=0
    _
  %s21 = ssub.s32 1, %s19
  %s22 = scalar_select 0, %s21, %s19
  $region1: #{tpu_custom_call.1} parent=0
    #allocation8 [shape = 'u8[4096]{0}', space=vmem, size = 0x1000, scoped, tag = 'input window, operand 1']
    #allocation9 [shape = 's32[2]{0}', space=sflag, size = 0x8, scoped, tag = 'scoped memory for tpu_custom_call.1']
    #allocation10 [shape = 's32[2]{0}', space=sflag, size = 0x8, scoped, tag = 'scoped memory for tpu_custom_call.1']
    #allocation11 [shape = 'u8[4096]{0}', space=vmem, size = 0x1000, scoped, tag = 'input window, operand 2']
    #allocation12 [shape = 's32[2]{0}', space=sflag, size = 0x8, scoped, tag = 'scoped memory for tpu_custom_call.1']
    #allocation13 [shape = 'u8[512]{0}', space=vmem, size = 0x400, scoped, tag = 'input window, operand 6, single buffered']
    #allocation14 [shape = 'u8[512]{0}', space=vmem, size = 0x400, scoped, tag = 'input window, operand 8, single buffered']
    #allocation15 [shape = 's32[1]{0}', space=sflag, size = 0x4, scoped, tag = 'scoped memory for tpu_custom_call.1']
    #allocation16 [shape = 'u8[8192]{0}', space=vmem, size = 0x2000, scoped, tag = 'input window, operand 10, single buffered']
    #allocation17 [shape = 'u8[8192]{0}', space=vmem, size = 0x2000, scoped, tag = 'input window, operand 11, single buffered']
    #allocation18 [shape = 's32[1]{0}', space=sflag, size = 0x4, scoped, tag = 'scoped memory for tpu_custom_call.1']
    #allocation19 [shape = 'u8[8192]{0}', space=vmem, size = 0x2000, scoped, tag = 'input window, operand 13, single buffered']
    #allocation20 [shape = 'u8[8192]{0}', space=vmem, size = 0x2000, scoped, tag = 'output window, operand 0']
    %23 = vsyncpa [#allocation9], 0
    %s24 = scalar_lea.sflag [#allocation9], 1
    %25 = vsyncpa %s24, 0
    %26 = vsyncpa [#allocation12], 0
    %s27 = scalar_lea.sflag [#allocation12], 1
    %28 = vsyncpa %s27, 0
    %29 = vsyncpa [#allocation15], 0
    %30 = vsyncpa [#allocation18], 0
    %31 = vsyncpa [#allocation10], 0
    %s32 = scalar_lea.sflag [#allocation10], 1
    %33 = vsyncpa %s32, 0
    loop: start=0, step=1, limit=4
    $region2: #{tpu_custom_call.1} parent=1 // loop_pre_header
      _
    $region3: #{tpu_custom_call.1} parent=1 // loop_header
      %s35 = sphi 0, %s39
      %p36 = scmp.ge.s32.totalorder %s35, 4
      %s42 = sphi 0, %s54
      %s43 = sphi 0, %s50
      %s44 = sphi 0, %s42
      %s45 = sphi 0, %s43
      %s46 = sphi 0, %s44
      %s47 = sphi 0, %s45
      %s59 = sphi 0, %s61
      %s62 = sphi 0, %s59
      %s63 = sphi 0, %s62
      %s79 = sphi 0, %s63
      %s85 = sphi 0, %s87
      %s88 = sphi 0, %s85
      %s89 = sphi 0, %s88
      %s105 = sphi 0, %s89
      %s111 = sphi 0, %s113
      %s114 = sphi 0, %s111
      %s115 = sphi 0, %s114
      %s131 = sphi 0, %s115
      %s135 = sphi 0, %s135
      %s137 = sphi 0, %s135
      %s138 = sphi 0, %s137
      %s152 = sphi 0, %s138
      %s156 = sphi 0, %s156
      %s158 = sphi 0, %s156
      %s159 = sphi 0, %s158
      %s173 = sphi 0, %s159
      %s177 = sphi 0, %s177
      %s179 = sphi 0, %s177
      %s180 = sphi 0, %s179
      %s194 = sphi 0, %s180
      %s198 = sphi 0, %s198
      %s200 = sphi 0, %s198
      %s201 = sphi 0, %s200
      %s215 = sphi 0, %s201
      %s219 = sphi 0, %s219
      %s221 = sphi 0, %s219
      %s222 = sphi 0, %s221
      %s236 = sphi 0, %s222
      %s240 = sphi 0, %s240
      %s242 = sphi 0, %s240
      %s243 = sphi 0, %s242
      %s257 = sphi 0, %s243
      %s261 = sphi 0, %s261
      %s263 = sphi 0, %s261
      %s264 = sphi 0, %s263
      %s278 = sphi 0, %s264
      %s282 = sphi 0, %s282
      %s284 = sphi 0, %s282
      %s285 = sphi 0, %s284
      %s299 = sphi 0, %s285
      %s303 = sphi 0, %s303
      %s305 = sphi 0, %s303
      %s306 = sphi 0, %s305
      %s320 = sphi 0, %s306
      %s324 = sphi 0, %s324
      %s326 = sphi 0, %s324
      %s327 = sphi 0, %s326
      %s341 = sphi 0, %s327
      %s345 = sphi 0, %s345
      %s347 = sphi 0, %s345
      %s348 = sphi 0, %s347
      %s362 = sphi 0, %s348
      %s366 = sphi 0, %s366
      %s368 = sphi 0, %s366
      %s369 = sphi 0, %s368
      %s383 = sphi 0, %s369
      %s387 = sphi 0, %s387
      %s389 = sphi 0, %s387
      %s390 = sphi 0, %s389
      %s404 = sphi 0, %s390
      %s408 = sphi 0, %s408
      %s410 = sphi 0, %s408
      %s411 = sphi 0, %s410
      %s425 = sphi 0, %s411
      %s429 = sphi 0, %s429
      %s431 = sphi 0, %s429
      %s432 = sphi 0, %s431
      %s446 = sphi 0, %s432
      %s454 = sphi 0, %s456
      %s457 = sphi 0, %s454
      %s458 = sphi 0, %s457
      %s474 = sphi 0, %s458
    $region4: #{tpu_custom_call.1} parent=1 // loop_header_branch
      %38 = sbr.rel (%p36) target = $region8
    $region5: #{tpu_custom_call.1} parent=1 // loop_body
      %s40 = ssub.s32 %s35, 1
      %s41 = ssub.s32 %s35, 2
      %s48 = sadd.s32 1, %s43
      %p49 = scmp.ge.s32.totalorder %s48, 1
      %s50 = scalar_select %p49, 0, %s48
      %s51 = sadd.s32 1, %s42
      %s52 = scalar_select %p49, %s51, %s42
      %p53 = scmp.ge.s32.totalorder %s52, 2
      %s54 = scalar_select %p53, 0, %s52
      %s55 = ssub.s32 %s42, %s54
      %s56 = ssub.s32 %s43, %s50
      %s57 = sor.u32 %s55, %s56
      %p58 = scmp.eq.s32.totalorder %s57, 0
      %s60 = sadd.s32 %s59, 1
      %s61 = scalar_select %p58, %s59, %s60
      %p64 = pneg %p58
      %p65 = scmp.eq.s32.totalorder %s35, 1
      %p66 = por %p64, %p65
      %p67 = scmp.ne.s32.totalorder %s59, %s62
      %p68 = scmp.eq.s32.totalorder %s35, 0
      %p69 = por %p67, %p68
      %p70 = scmp.ne.s32.totalorder %s59, %s62
      %p71 = scmp.eq.s32.totalorder %s40, 1
      %p72 = por %p70, %p71
      %p73 = scmp.ne.s32.totalorder %s62, %s63
      %p74 = scmp.eq.s32.totalorder %s40, 0
      %p75 = por %p73, %p74
      %p76 = scmp.ne.s32.totalorder %s62, %s63
      %p77 = scmp.eq.s32.totalorder %s41, 1
      %p78 = por %p76, %p77
      %p80 = scmp.ne.s32.totalorder %s63, %s79
      %p81 = scmp.eq.s32.totalorder %s41, 0
      %p82 = por %p80, %p81
      %s83 = ssub.s32 %s42, %s54
      %p84 = scmp.eq.s32.totalorder %s83, 0
      %s86 = sadd.s32 %s85, 1
      %s87 = scalar_select %p84, %s85, %s86
      %p90 = pneg %p84
      %p91 = scmp.eq.s32.totalorder %s35, 1
      %p92 = por %p90, %p91
      %p93 = scmp.ne.s32.totalorder %s85, %s88
      %p94 = scmp.eq.s32.totalorder %s35, 0
      %p95 = por %p93, %p94
      %p96 = scmp.ne.s32.totalorder %s85, %s88
      %p97 = scmp.eq.s32.totalorder %s40, 1
      %p98 = por %p96, %p97
      %p99 = scmp.ne.s32.totalorder %s88, %s89
      %p100 = scmp.eq.s32.totalorder %s40, 0
      %p101 = por %p99, %p100
      %p102 = scmp.ne.s32.totalorder %s88, %s89
      %p103 = scmp.eq.s32.totalorder %s41, 1
      %p104 = por %p102, %p103
      %p106 = scmp.ne.s32.totalorder %s89, %s105
      %p107 = scmp.eq.s32.totalorder %s41, 0
      %p108 = por %p106, %p107
      %s109 = ssub.s32 %s42, %s54
      %p110 = scmp.eq.s32.totalorder %s109, 0
      %s112 = sadd.s32 %s111, 1
      %s113 = scalar_select %p110, %s111, %s112
      %p116 = pneg %p110
      %p117 = scmp.eq.s32.totalorder %s35, 1
      %p118 = por %p116, %p117
      %p119 = scmp.ne.s32.totalorder %s111, %s114
      %p120 = scmp.eq.s32.totalorder %s35, 0
      %p121 = por %p119, %p120
      %p122 = scmp.ne.s32.totalorder %s111, %s114
      %p123 = scmp.eq.s32.totalorder %s40, 1
      %p124 = por %p122, %p123
      %p125 = scmp.ne.s32.totalorder %s114, %s115
      %p126 = scmp.eq.s32.totalorder %s40, 0
      %p127 = por %p125, %p126
      %p128 = scmp.ne.s32.totalorder %s114, %s115
      %p129 = scmp.eq.s32.totalorder %s41, 1
      %p130 = por %p128, %p129
      %p132 = scmp.ne.s32.totalorder %s115, %s131
      %p133 = scmp.eq.s32.totalorder %s41, 0
      %p134 = por %p132, %p133
      %s136 = sadd.s32 %s135, 1
      %p139 = scmp.eq.s32.totalorder %s35, 1
      %p140 = scmp.ne.s32.totalorder %s135, %s137
      %p141 = scmp.eq.s32.totalorder %s35, 0
      %p142 = por %p140, %p141
      %p143 = scmp.ne.s32.totalorder %s135, %s137
      %p144 = scmp.eq.s32.totalorder %s40, 1
      %p145 = por %p143, %p144
      %p146 = scmp.ne.s32.totalorder %s137, %s138
      %p147 = scmp.eq.s32.totalorder %s40, 0
      %p148 = por %p146, %p147
      %p149 = scmp.ne.s32.totalorder %s137, %s138
      %p150 = scmp.eq.s32.totalorder %s41, 1
      %p151 = por %p149, %p150
      %p153 = scmp.ne.s32.totalorder %s138, %s152
      %p154 = scmp.eq.s32.totalorder %s41, 0
      %p155 = por %p153, %p154
      %s157 = sadd.s32 %s156, 1
      %p160 = scmp.eq.s32.totalorder %s35, 1
      %p161 = scmp.ne.s32.totalorder %s156, %s158
      %p162 = scmp.eq.s32.totalorder %s35, 0
      %p163 = por %p161, %p162
      %p164 = scmp.ne.s32.totalorder %s156, %s158
      %p165 = scmp.eq.s32.totalorder %s40, 1
      %p166 = por %p164, %p165
      %p167 = scmp.ne.s32.totalorder %s158, %s159
      %p168 = scmp.eq.s32.totalorder %s40, 0
      %p169 = por %p167, %p168
      %p170 = scmp.ne.s32.totalorder %s158, %s159
      %p171 = scmp.eq.s32.totalorder %s41, 1
      %p172 = por %p170, %p171
      %p174 = scmp.ne.s32.totalorder %s159, %s173
      %p175 = scmp.eq.s32.totalorder %s41, 0
      %p176 = por %p174, %p175
      %s178 = sadd.s32 %s177, 1
      %p181 = scmp.eq.s32.totalorder %s35, 1
      %p182 = scmp.ne.s32.totalorder %s177, %s179
      %p183 = scmp.eq.s32.totalorder %s35, 0
      %p184 = por %p182, %p183
      %p185 = scmp.ne.s32.totalorder %s177, %s179
      %p186 = scmp.eq.s32.totalorder %s40, 1
      %p187 = por %p185, %p186
      %p188 = scmp.ne.s32.totalorder %s179, %s180
      %p189 = scmp.eq.s32.totalorder %s40, 0
      %p190 = por %p188, %p189
      %p191 = scmp.ne.s32.totalorder %s179, %s180
      %p192 = scmp.eq.s32.totalorder %s41, 1
      %p193 = por %p191, %p192
      %p195 = scmp.ne.s32.totalorder %s180, %s194
      %p196 = scmp.eq.s32.totalorder %s41, 0
      %p197 = por %p195, %p196
      %s199 = sadd.s32 %s198, 1
      %p202 = scmp.eq.s32.totalorder %s35, 1
      %p203 = scmp.ne.s32.totalorder %s198, %s200
      %p204 = scmp.eq.s32.totalorder %s35, 0
      %p205 = por %p203, %p204
      %p206 = scmp.ne.s32.totalorder %s198, %s200
      %p207 = scmp.eq.s32.totalorder %s40, 1
      %p208 = por %p206, %p207
      %p209 = scmp.ne.s32.totalorder %s200, %s201
      %p210 = scmp.eq.s32.totalorder %s40, 0
      %p211 = por %p209, %p210
      %p212 = scmp.ne.s32.totalorder %s200, %s201
      %p213 = scmp.eq.s32.totalorder %s41, 1
      %p214 = por %p212, %p213
      %p216 = scmp.ne.s32.totalorder %s201, %s215
      %p217 = scmp.eq.s32.totalorder %s41, 0
      %p218 = por %p216, %p217
      %s220 = sadd.s32 %s219, 1
      %p223 = scmp.eq.s32.totalorder %s35, 1
      %p224 = scmp.ne.s32.totalorder %s219, %s221
      %p225 = scmp.eq.s32.totalorder %s35, 0
      %p226 = por %p224, %p225
      %p227 = scmp.ne.s32.totalorder %s219, %s221
      %p228 = scmp.eq.s32.totalorder %s40, 1
      %p229 = por %p227, %p228
      %p230 = scmp.ne.s32.totalorder %s221, %s222
      %p231 = scmp.eq.s32.totalorder %s40, 0
      %p232 = por %p230, %p231
      %p233 = scmp.ne.s32.totalorder %s221, %s222
      %p234 = scmp.eq.s32.totalorder %s41, 1
      %p235 = por %p233, %p234
      %p237 = scmp.ne.s32.totalorder %s222, %s236
      %p238 = scmp.eq.s32.totalorder %s41, 0
      %p239 = por %p237, %p238
      %s241 = sadd.s32 %s240, 1
      %p244 = scmp.eq.s32.totalorder %s35, 1
      %p245 = scmp.ne.s32.totalorder %s240, %s242
      %p246 = scmp.eq.s32.totalorder %s35, 0
      %p247 = por %p245, %p246
      %p248 = scmp.ne.s32.totalorder %s240, %s242
      %p249 = scmp.eq.s32.totalorder %s40, 1
      %p250 = por %p248, %p249
      %p251 = scmp.ne.s32.totalorder %s242, %s243
      %p252 = scmp.eq.s32.totalorder %s40, 0
      %p253 = por %p251, %p252
      %p254 = scmp.ne.s32.totalorder %s242, %s243
      %p255 = scmp.eq.s32.totalorder %s41, 1
      %p256 = por %p254, %p255
      %p258 = scmp.ne.s32.totalorder %s243, %s257
      %p259 = scmp.eq.s32.totalorder %s41, 0
      %p260 = por %p258, %p259
      %s262 = sadd.s32 %s261, 1
      %p265 = scmp.eq.s32.totalorder %s35, 1
      %p266 = scmp.ne.s32.totalorder %s261, %s263
      %p267 = scmp.eq.s32.totalorder %s35, 0
      %p268 = por %p266, %p267
      %p269 = scmp.ne.s32.totalorder %s261, %s263
      %p270 = scmp.eq.s32.totalorder %s40, 1
      %p271 = por %p269, %p270
      %p272 = scmp.ne.s32.totalorder %s263, %s264
      %p273 = scmp.eq.s32.totalorder %s40, 0
      %p274 = por %p272, %p273
      %p275 = scmp.ne.s32.totalorder %s263, %s264
      %p276 = scmp.eq.s32.totalorder %s41, 1
      %p277 = por %p275, %p276
      %p279 = scmp.ne.s32.totalorder %s264, %s278
      %p280 = scmp.eq.s32.totalorder %s41, 0
      %p281 = por %p279, %p280
      %s283 = sadd.s32 %s282, 1
      %p286 = scmp.eq.s32.totalorder %s35, 1
      %p287 = scmp.ne.s32.totalorder %s282, %s284
      %p288 = scmp.eq.s32.totalorder %s35, 0
      %p289 = por %p287, %p288
      %p290 = scmp.ne.s32.totalorder %s282, %s284
      %p291 = scmp.eq.s32.totalorder %s40, 1
      %p292 = por %p290, %p291
      %p293 = scmp.ne.s32.totalorder %s284, %s285
      %p294 = scmp.eq.s32.totalorder %s40, 0
      %p295 = por %p293, %p294
      %p296 = scmp.ne.s32.totalorder %s284, %s285
      %p297 = scmp.eq.s32.totalorder %s41, 1
      %p298 = por %p296, %p297
      %p300 = scmp.ne.s32.totalorder %s285, %s299
      %p301 = scmp.eq.s32.totalorder %s41, 0
      %p302 = por %p300, %p301
      %s304 = sadd.s32 %s303, 1
      %p307 = scmp.eq.s32.totalorder %s35, 1
      %p308 = scmp.ne.s32.totalorder %s303, %s305
      %p309 = scmp.eq.s32.totalorder %s35, 0
      %p310 = por %p308, %p309
      %p311 = scmp.ne.s32.totalorder %s303, %s305
      %p312 = scmp.eq.s32.totalorder %s40, 1
      %p313 = por %p311, %p312
      %p314 = scmp.ne.s32.totalorder %s305, %s306
      %p315 = scmp.eq.s32.totalorder %s40, 0
      %p316 = por %p314, %p315
      %p317 = scmp.ne.s32.totalorder %s305, %s306
      %p318 = scmp.eq.s32.totalorder %s41, 1
      %p319 = por %p317, %p318
      %p321 = scmp.ne.s32.totalorder %s306, %s320
      %p322 = scmp.eq.s32.totalorder %s41, 0
      %p323 = por %p321, %p322
      %s325 = sadd.s32 %s324, 1
      %p328 = scmp.eq.s32.totalorder %s35, 1
      %p329 = scmp.ne.s32.totalorder %s324, %s326
      %p330 = scmp.eq.s32.totalorder %s35, 0
      %p331 = por %p329, %p330
      %p332 = scmp.ne.s32.totalorder %s324, %s326
      %p333 = scmp.eq.s32.totalorder %s40, 1
      %p334 = por %p332, %p333
      %p335 = scmp.ne.s32.totalorder %s326, %s327
      %p336 = scmp.eq.s32.totalorder %s40, 0
      %p337 = por %p335, %p336
      %p338 = scmp.ne.s32.totalorder %s326, %s327
      %p339 = scmp.eq.s32.totalorder %s41, 1
      %p340 = por %p338, %p339
      %p342 = scmp.ne.s32.totalorder %s327, %s341
      %p343 = scmp.eq.s32.totalorder %s41, 0
      %p344 = por %p342, %p343
      %s346 = sadd.s32 %s345, 1
      %p349 = scmp.eq.s32.totalorder %s35, 1
      %p350 = scmp.ne.s32.totalorder %s345, %s347
      %p351 = scmp.eq.s32.totalorder %s35, 0
      %p352 = por %p350, %p351
      %p353 = scmp.ne.s32.totalorder %s345, %s347
      %p354 = scmp.eq.s32.totalorder %s40, 1
      %p355 = por %p353, %p354
      %p356 = scmp.ne.s32.totalorder %s347, %s348
      %p357 = scmp.eq.s32.totalorder %s40, 0
      %p358 = por %p356, %p357
      %p359 = scmp.ne.s32.totalorder %s347, %s348
      %p360 = scmp.eq.s32.totalorder %s41, 1
      %p361 = por %p359, %p360
      %p363 = scmp.ne.s32.totalorder %s348, %s362
      %p364 = scmp.eq.s32.totalorder %s41, 0
      %p365 = por %p363, %p364
      %s367 = sadd.s32 %s366, 1
      %p370 = scmp.eq.s32.totalorder %s35, 1
      %p371 = scmp.ne.s32.totalorder %s366, %s368
      %p372 = scmp.eq.s32.totalorder %s35, 0
      %p373 = por %p371, %p372
      %p374 = scmp.ne.s32.totalorder %s366, %s368
      %p375 = scmp.eq.s32.totalorder %s40, 1
      %p376 = por %p374, %p375
      %p377 = scmp.ne.s32.totalorder %s368, %s369
      %p378 = scmp.eq.s32.totalorder %s40, 0
      %p379 = por %p377, %p378
      %p380 = scmp.ne.s32.totalorder %s368, %s369
      %p381 = scmp.eq.s32.totalorder %s41, 1
      %p382 = por %p380, %p381
      %p384 = scmp.ne.s32.totalorder %s369, %s383
      %p385 = scmp.eq.s32.totalorder %s41, 0
      %p386 = por %p384, %p385
      %s388 = sadd.s32 %s387, 1
      %p391 = scmp.eq.s32.totalorder %s35, 1
      %p392 = scmp.ne.s32.totalorder %s387, %s389
      %p393 = scmp.eq.s32.totalorder %s35, 0
      %p394 = por %p392, %p393
      %p395 = scmp.ne.s32.totalorder %s387, %s389
      %p396 = scmp.eq.s32.totalorder %s40, 1
      %p397 = por %p395, %p396
      %p398 = scmp.ne.s32.totalorder %s389, %s390
      %p399 = scmp.eq.s32.totalorder %s40, 0
      %p400 = por %p398, %p399
      %p401 = scmp.ne.s32.totalorder %s389, %s390
      %p402 = scmp.eq.s32.totalorder %s41, 1
      %p403 = por %p401, %p402
      %p405 = scmp.ne.s32.totalorder %s390, %s404
      %p406 = scmp.eq.s32.totalorder %s41, 0
      %p407 = por %p405, %p406
      %s409 = sadd.s32 %s408, 1
      %p412 = scmp.eq.s32.totalorder %s35, 1
      %p413 = scmp.ne.s32.totalorder %s408, %s410
      %p414 = scmp.eq.s32.totalorder %s35, 0
      %p415 = por %p413, %p414
      %p416 = scmp.ne.s32.totalorder %s408, %s410
      %p417 = scmp.eq.s32.totalorder %s40, 1
      %p418 = por %p416, %p417
      %p419 = scmp.ne.s32.totalorder %s410, %s411
      %p420 = scmp.eq.s32.totalorder %s40, 0
      %p421 = por %p419, %p420
      %p422 = scmp.ne.s32.totalorder %s410, %s411
      %p423 = scmp.eq.s32.totalorder %s41, 1
      %p424 = por %p422, %p423
      %p426 = scmp.ne.s32.totalorder %s411, %s425
      %p427 = scmp.eq.s32.totalorder %s41, 0
      %p428 = por %p426, %p427
      %s430 = sadd.s32 %s429, 1
      %p433 = scmp.eq.s32.totalorder %s35, 1
      %p434 = scmp.ne.s32.totalorder %s429, %s431
      %p435 = scmp.eq.s32.totalorder %s35, 0
      %p436 = por %p434, %p435
      %p437 = scmp.ne.s32.totalorder %s429, %s431
      %p438 = scmp.eq.s32.totalorder %s40, 1
      %p439 = por %p437, %p438
      %p440 = scmp.ne.s32.totalorder %s431, %s432
      %p441 = scmp.eq.s32.totalorder %s40, 0
      %p442 = por %p440, %p441
      %p443 = scmp.ne.s32.totalorder %s431, %s432
      %p444 = scmp.eq.s32.totalorder %s41, 1
      %p445 = por %p443, %p444
      %p447 = scmp.ne.s32.totalorder %s432, %s446
      %p448 = scmp.eq.s32.totalorder %s41, 0
      %p449 = por %p447, %p448
      %s450 = ssub.s32 %s42, %s54
      %s451 = ssub.s32 %s43, %s50
      %s452 = sor.u32 %s450, %s451
      %p453 = scmp.eq.s32.totalorder %s452, 0
      %s455 = sadd.s32 %s454, 1
      %s456 = scalar_select %p453, %s454, %s455
      %p459 = pneg %p453
      %p460 = scmp.eq.s32.totalorder %s35, 1
      %p461 = por %p459, %p460
      %p462 = scmp.ne.s32.totalorder %s454, %s457
      %p463 = scmp.eq.s32.totalorder %s35, 0
      %p464 = por %p462, %p463
      %p465 = scmp.ne.s32.totalorder %s454, %s457
      %p466 = scmp.eq.s32.totalorder %s40, 1
      %p467 = por %p465, %p466
      %p468 = scmp.ne.s32.totalorder %s457, %s458
      %p469 = scmp.eq.s32.totalorder %s40, 0
      %p470 = por %p468, %p469
      %p471 = scmp.ne.s32.totalorder %s457, %s458
      %p472 = scmp.eq.s32.totalorder %s41, 1
      %p473 = por %p471, %p472
      %p475 = scmp.ne.s32.totalorder %s458, %s474
      %p476 = scmp.eq.s32.totalorder %s41, 0
      %p477 = por %p475, %p476
      %p478 = scmp.le.s32.totalorder 1, %s35
      %p479 = scmp.lt.s32.totalorder %s35, 3
      %p480 = pnand %p478, %p479
      %p481 = pneg %p480
      // Predicated region
      $region9: #{tpu_custom_call.1} parent=5 // pred_check
        _
      $region10: #{tpu_custom_call.1} parent=5 // pred_check_branch
        %483 = sbr.rel (%p480) target = $region12
      $region11: #{tpu_custom_call.1} parent=5 // pred_region
        %s484 = ssub.s32 %s35, 1
        // Predicated region
        $region13: #{tpu_custom_call.1} parent=11 // pred_check
          %p485 = pneg %p148
        $region14: #{tpu_custom_call.1} parent=11 // pred_check_branch
          %487 = sbr.rel (%p485) target = $region16
        $region15: #{tpu_custom_call.1} parent=11 // pred_region
          _
        $region16: #{tpu_custom_call.1} parent=11 // pred_fallthru
          _
        // Predicated region
        $region17: #{tpu_custom_call.1} parent=11 // pred_check
          %p488 = pneg %p169
        $region18: #{tpu_custom_call.1} parent=11 // pred_check_branch
          %490 = sbr.rel (%p488) target = $region20
        $region19: #{tpu_custom_call.1} parent=11 // pred_region
          _
        $region20: #{tpu_custom_call.1} parent=11 // pred_fallthru
          _
        // Predicated region
        $region21: #{tpu_custom_call.1} parent=11 // pred_check
          %p491 = pneg %p190
        $region22: #{tpu_custom_call.1} parent=11 // pred_check_branch
          %493 = sbr.rel (%p491) target = $region24
        $region23: #{tpu_custom_call.1} parent=11 // pred_region
          _
        $region24: #{tpu_custom_call.1} parent=11 // pred_fallthru
          _
        // Predicated region
        $region25: #{tpu_custom_call.1} parent=11 // pred_check
          %p494 = pneg %p211
        $region26: #{tpu_custom_call.1} parent=11 // pred_check_branch
          %496 = sbr.rel (%p494) target = $region28
        $region27: #{tpu_custom_call.1} parent=11 // pred_region
          %498 = vsyncadd [#allocation12], 0
          %s500 = sshll.u32 %s6, 4
          %s501 = int_to_ptr.hbm [resolvable:$true] %s500
          %s502 = sshll.u32 [#allocation13], 4
          %s503 = int_to_ptr.vmem [resolvable:$true] %s502
          %505 = dma.hbm_to_vmem [thread:$0]  %s501, 16, %s503, [#allocation12]
        $region28: #{tpu_custom_call.1} parent=11 // pred_fallthru
          _
        // Predicated region
        $region29: #{tpu_custom_call.1} parent=11 // pred_check
          %p506 = pneg %p232
        $region30: #{tpu_custom_call.1} parent=11 // pred_check_branch
          %508 = sbr.rel (%p506) target = $region32
        $region31: #{tpu_custom_call.1} parent=11 // pred_region
          _
        $region32: #{tpu_custom_call.1} parent=11 // pred_fallthru
          _
        // Predicated region
        $region33: #{tpu_custom_call.1} parent=11 // pred_check
          %p509 = pneg %p253
        $region34: #{tpu_custom_call.1} parent=11 // pred_check_branch
          %511 = sbr.rel (%p509) target = $region36
        $region35: #{tpu_custom_call.1} parent=11 // pred_region
          %513 = vsyncadd [#allocation15], 0
          %s515 = sshll.u32 %s8, 4
          %s516 = int_to_ptr.hbm [resolvable:$true] %s515
          %s517 = sshll.u32 [#allocation14], 4
          %s518 = int_to_ptr.vmem [resolvable:$true] %s517
          %520 = dma.hbm_to_vmem [thread:$0]  %s516, 16, %s518, [#allocation15]
        $region36: #{tpu_custom_call.1} parent=11 // pred_fallthru
          _
        // Predicated region
        $region37: #{tpu_custom_call.1} parent=11 // pred_check
          %p521 = pneg %p274
        $region38: #{tpu_custom_call.1} parent=11 // pred_check_branch
          %523 = sbr.rel (%p521) target = $region40
        $region39: #{tpu_custom_call.1} parent=11 // pred_region
          _
        $region40: #{tpu_custom_call.1} parent=11 // pred_fallthru
          _
        // Predicated region
        $region41: #{tpu_custom_call.1} parent=11 // pred_check
          %p524 = pneg %p295
        $region42: #{tpu_custom_call.1} parent=11 // pred_check_branch
          %526 = sbr.rel (%p524) target = $region44
        $region43: #{tpu_custom_call.1} parent=11 // pred_region
          %528 = vsyncadd [#allocation15], 0
          %s529 = sshll.u32 %s10, 4
          %s530 = int_to_ptr.hbm [resolvable:$true] %s529
          %s531 = sshll.u32 [#allocation16], 4
          %s532 = int_to_ptr.vmem [resolvable:$true] %s531
          %537 = dma.hbm_to_vmem [thread:$0]  %s530, 256, %s532, [#allocation15], 64, 64, 4
        $region44: #{tpu_custom_call.1} parent=11 // pred_fallthru
          _
        // Predicated region
        $region45: #{tpu_custom_call.1} parent=11 // pred_check
          %p538 = pneg %p316
        $region46: #{tpu_custom_call.1} parent=11 // pred_check_branch
          %540 = sbr.rel (%p538) target = $region48
        $region47: #{tpu_custom_call.1} parent=11 // pred_region
          %542 = vsyncadd [#allocation18], 0
          %s543 = sshll.u32 %s11, 4
          %s544 = int_to_ptr.hbm [resolvable:$true] %s543
          %s545 = sshll.u32 [#allocation17], 4
          %s546 = int_to_ptr.vmem [resolvable:$true] %s545
          %551 = dma.hbm_to_vmem [thread:$0]  %s544, 256, %s546, [#allocation18], 64, 64, 4
        $region48: #{tpu_custom_call.1} parent=11 // pred_fallthru
          _
        // Predicated region
        $region49: #{tpu_custom_call.1} parent=11 // pred_check
          %p552 = pneg %p337
        $region50: #{tpu_custom_call.1} parent=11 // pred_check_branch
          %554 = sbr.rel (%p552) target = $region52
        $region51: #{tpu_custom_call.1} parent=11 // pred_region
          _
        $region52: #{tpu_custom_call.1} parent=11 // pred_fallthru
          _
        // Predicated region
        $region53: #{tpu_custom_call.1} parent=11 // pred_check
          %p555 = pneg %p358
        $region54: #{tpu_custom_call.1} parent=11 // pred_check_branch
          %557 = sbr.rel (%p555) target = $region56
        $region55: #{tpu_custom_call.1} parent=11 // pred_region
          %559 = vsyncadd [#allocation18], 0
          %s560 = sshll.u32 %s13, 4
          %s561 = int_to_ptr.hbm [resolvable:$true] %s560
          %s562 = sshll.u32 [#allocation19], 4
          %s563 = int_to_ptr.vmem [resolvable:$true] %s562
          %568 = dma.hbm_to_vmem [thread:$0]  %s561, 256, %s563, [#allocation18], 64, 64, 4
        $region56: #{tpu_custom_call.1} parent=11 // pred_fallthru
          _
        // Predicated region
        $region57: #{tpu_custom_call.1} parent=11 // pred_check
          %p569 = pneg %p379
        $region58: #{tpu_custom_call.1} parent=11 // pred_check_branch
          %571 = sbr.rel (%p569) target = $region60
        $region59: #{tpu_custom_call.1} parent=11 // pred_region
          _
        $region60: #{tpu_custom_call.1} parent=11 // pred_fallthru
          _
        // Predicated region
        $region61: #{tpu_custom_call.1} parent=11 // pred_check
          %p572 = pneg %p400
        $region62: #{tpu_custom_call.1} parent=11 // pred_check_branch
          %574 = sbr.rel (%p572) target = $region64
        $region63: #{tpu_custom_call.1} parent=11 // pred_region
          _
        $region64: #{tpu_custom_call.1} parent=11 // pred_fallthru
          _
        // Predicated region
        $region65: #{tpu_custom_call.1} parent=11 // pred_check
          %p575 = pneg %p421
        $region66: #{tpu_custom_call.1} parent=11 // pred_check_branch
          %577 = sbr.rel (%p575) target = $region68
        $region67: #{tpu_custom_call.1} parent=11 // pred_region
          _
        $region68: #{tpu_custom_call.1} parent=11 // pred_fallthru
          _
        // Predicated region
        $region69: #{tpu_custom_call.1} parent=11 // pred_check
          %p578 = pneg %p442
        $region70: #{tpu_custom_call.1} parent=11 // pred_check_branch
          %580 = sbr.rel (%p578) target = $region72
        $region71: #{tpu_custom_call.1} parent=11 // pred_region
          _
        $region72: #{tpu_custom_call.1} parent=11 // pred_fallthru
          _
      $region12: #{tpu_custom_call.1} parent=5 // pred_fallthru
        _
      %p581 = scmp.lt.s32.totalorder %s35, 2
      // Predicated region
      $region73: #{tpu_custom_call.1} parent=5 // pred_check
        %p582 = pneg %p581
      $region74: #{tpu_custom_call.1} parent=5 // pred_check_branch
        %584 = sbr.rel (%p582) target = $region76
      $region75: #{tpu_custom_call.1} parent=5 // pred_region
        // Predicated region
        $region77: #{tpu_custom_call.1} parent=75 // pred_check
          %p585 = pneg %p69
        $region78: #{tpu_custom_call.1} parent=75 // pred_check_branch
          %587 = sbr.rel (%p585) target = $region80
        $region79: #{tpu_custom_call.1} parent=75 // pred_region
          %p588 = scmp.lt.s32.totalorder %s42, 1
          %s589 = scalar_select %p588, %s42, 1
          %p590 = scmp.lt.s32.totalorder %s43, 0
          %s591 = scalar_select %p590, %s43, 0
          %s592 = sadd.s32 %s591, %s589
          %s593 = smul.addr %s592, 8
          %s594 = scalar_lea.vmem %s0, %s593
        $region80: #{tpu_custom_call.1} parent=75 // pred_fallthru
          _
        // Predicated region
        $region81: #{tpu_custom_call.1} parent=75 // pred_check
          %p595 = pneg %p95
        $region82: #{tpu_custom_call.1} parent=75 // pred_check_branch
          %597 = sbr.rel (%p595) target = $region84
        $region83: #{tpu_custom_call.1} parent=75 // pred_region
          %s598 = sand.u32 %s85, 1
          %s599 = scalar_lea.sflag [#allocation9], %s598
          %s600 = sand.u32 %s85, 1
          %s601 = smul.addr %s600, 4
          %s602 = scalar_lea.vmem [#allocation8], %s601
          %604 = vsyncadd %s599, 0
          %s605 = smul.addr %s42, 4
          %s606 = scalar_lea.hbm %s1, %s605
          %s608 = sshll.u32 %s606, 4
          %s609 = int_to_ptr.hbm [resolvable:$true] %s608
          %s610 = sshll.u32 %s602, 4
          %s611 = int_to_ptr.vmem [resolvable:$true] %s610
          %613 = dma.hbm_to_vmem [thread:$0]  %s609, 64, %s611, %s599
        $region84: #{tpu_custom_call.1} parent=75 // pred_fallthru
          _
        // Predicated region
        $region85: #{tpu_custom_call.1} parent=75 // pred_check
          %p614 = pneg %p121
        $region86: #{tpu_custom_call.1} parent=75 // pred_check_branch
          %616 = sbr.rel (%p614) target = $region88
        $region87: #{tpu_custom_call.1} parent=75 // pred_region
          %s617 = sand.u32 %s35, 1
          %s618 = scalar_lea.sflag [#allocation12], %s617
          %s619 = sand.u32 %s111, 1
          %s620 = smul.addr %s619, 4
          %s621 = scalar_lea.vmem [#allocation11], %s620
          %623 = vsyncadd %s618, 0
          %s624 = smul.addr %s42, 4
          %s625 = scalar_lea.hbm %s2, %s624
          %s627 = sshll.u32 %s625, 4
          %s628 = int_to_ptr.hbm [resolvable:$true] %s627
          %s629 = sshll.u32 %s621, 4
          %s630 = int_to_ptr.vmem [resolvable:$true] %s629
          %632 = dma.hbm_to_vmem [thread:$0]  %s628, 64, %s630, %s618
        $region88: #{tpu_custom_call.1} parent=75 // pred_fallthru
          _
      $region76: #{tpu_custom_call.1} parent=5 // pred_fallthru
        _
      %p633 = scmp.le.s32.totalorder 1, %s35
      %p634 = scmp.lt.s32.totalorder %s35, 3
      %p635 = pnand %p633, %p634
      %p636 = pneg %p635
      // Predicated region
      $region89: #{tpu_custom_call.1} parent=5 // pred_check
        _
      $region90: #{tpu_custom_call.1} parent=5 // pred_check_branch
        %638 = sbr.rel (%p635) target = $region92
      $region91: #{tpu_custom_call.1} parent=5 // pred_region
        %s639 = ssub.s32 %s35, 1
        %s640 = sand.u32 %s88, 1
        %s641 = scalar_lea.sflag [#allocation9], %s640
        %s642 = sand.u32 %s88, 1
        %s643 = smul.addr %s642, 4
        %s644 = scalar_lea.vmem [#allocation8], %s643
        // Predicated region
        $region93: #{tpu_custom_call.1} parent=91 // pred_check
          %p645 = pneg %p101
        $region94: #{tpu_custom_call.1} parent=91 // pred_check_branch
          %647 = sbr.rel (%p645) target = $region96
        $region95: #{tpu_custom_call.1} parent=91 // pred_region
          %649 = dma.done %s641, 64
        $region96: #{tpu_custom_call.1} parent=91 // pred_fallthru
          _
        %s650 = sand.u32 %s40, 1
        %s651 = scalar_lea.sflag [#allocation12], %s650
        %s652 = sand.u32 %s114, 1
        %s653 = smul.addr %s652, 4
        %s654 = scalar_lea.vmem [#allocation11], %s653
        // Predicated region
        $region97: #{tpu_custom_call.1} parent=91 // pred_check
          %p655 = pneg %p127
        $region98: #{tpu_custom_call.1} parent=91 // pred_check_branch
          %657 = sbr.rel (%p655) target = $region100
        $region99: #{tpu_custom_call.1} parent=91 // pred_region
          %659 = dma.done %s651, 64
        $region100: #{tpu_custom_call.1} parent=91 // pred_fallthru
          _
        // Predicated region
        $region101: #{tpu_custom_call.1} parent=91 // pred_check
          %p660 = pneg %p211
        $region102: #{tpu_custom_call.1} parent=91 // pred_check_branch
          %662 = sbr.rel (%p660) target = $region104
        $region103: #{tpu_custom_call.1} parent=91 // pred_region
          %664 = dma.done [#allocation12], 16
        $region104: #{tpu_custom_call.1} parent=91 // pred_fallthru
          _
        // Predicated region
        $region105: #{tpu_custom_call.1} parent=91 // pred_check
          %p665 = pneg %p253
        $region106: #{tpu_custom_call.1} parent=91 // pred_check_branch
          %667 = sbr.rel (%p665) target = $region108
        $region107: #{tpu_custom_call.1} parent=91 // pred_region
          %669 = dma.done [#allocation15], 16
        $region108: #{tpu_custom_call.1} parent=91 // pred_fallthru
          _
        // Predicated region
        $region109: #{tpu_custom_call.1} parent=91 // pred_check
          %p670 = pneg %p295
        $region110: #{tpu_custom_call.1} parent=91 // pred_check_branch
          %672 = sbr.rel (%p670) target = $region112
        $region111: #{tpu_custom_call.1} parent=91 // pred_region
          %674 = dma.done [#allocation15], 256
        $region112: #{tpu_custom_call.1} parent=91 // pred_fallthru
          _
        // Predicated region
        $region113: #{tpu_custom_call.1} parent=91 // pred_check
          %p675 = pneg %p316
        $region114: #{tpu_custom_call.1} parent=91 // pred_check_branch
          %677 = sbr.rel (%p675) target = $region116
        $region115: #{tpu_custom_call.1} parent=91 // pred_region
          %679 = dma.done [#allocation18], 256
        $region116: #{tpu_custom_call.1} parent=91 // pred_fallthru
          _
        // Predicated region
        $region117: #{tpu_custom_call.1} parent=91 // pred_check
          %p680 = pneg %p358
        $region118: #{tpu_custom_call.1} parent=91 // pred_check_branch
          %682 = sbr.rel (%p680) target = $region120
        $region119: #{tpu_custom_call.1} parent=91 // pred_region
          %684 = dma.done [#allocation18], 256
        $region120: #{tpu_custom_call.1} parent=91 // pred_fallthru
          _
        %p685 = scmp.lt.s32.totalorder %s44, 1
        %s686 = scalar_select %p685, %s44, 1
        %p687 = scmp.lt.s32.totalorder %s45, 0
        %s688 = scalar_select %p687, %s45, 0
        %s689 = sadd.s32 %s688, %s686
        %s690 = smul.addr %s689, 8
        %s691 = scalar_lea.vmem %s0, %s690
        %p692 = pneg %p75
        %p693 = pneg %p72
        %s694 = sand.u32 %s88, 1
        %s695 = scalar_lea.sflag [#allocation9], %s694
        %s696 = sand.u32 %s88, 1
        %s697 = smul.addr %s696, 4
        %s698 = scalar_lea.vmem [#allocation8], %s697
        %p699 = pneg %p101
        %p700 = pneg %p98
        %s701 = sand.u32 %s40, 1
        %s702 = scalar_lea.sflag [#allocation12], %s701
        %s703 = sand.u32 %s114, 1
        %s704 = smul.addr %s703, 4
        %s705 = scalar_lea.vmem [#allocation11], %s704
        %p706 = pneg %p127
        %p707 = pneg %p124
        %p708 = pneg %p148
        %p709 = pneg %p145
        %p710 = pneg %p169
        %p711 = pneg %p166
        %p712 = pneg %p190
        %p713 = pneg %p187
        %p714 = pneg %p211
        %p715 = pneg %p208
        %p716 = pneg %p232
        %p717 = pneg %p229
        %p718 = pneg %p253
        %p719 = pneg %p250
        %p720 = pneg %p274
        %p721 = pneg %p271
        %p722 = pneg %p295
        %p723 = pneg %p292
        %p724 = pneg %p316
        %p725 = pneg %p313
        %p726 = pneg %p337
        %p727 = pneg %p334
        %p728 = pneg %p358
        %p729 = pneg %p355
        %p730 = pneg %p379
        %p731 = pneg %p376
        %p732 = pneg %p400
        %p733 = pneg %p397
        %p734 = pneg %p421
        %p735 = pneg %p418
        %p736 = pneg %p442
        %p737 = pneg %p439
        %p738 = pneg %p470
        %p739 = pneg %p467
        %s740 = sand.u32 %s457, 1
        %s741 = scalar_lea.sflag [#allocation10], %s740
        %s742 = sand.u32 %s457, 1
        %s743 = smul.addr %s742, 8
        %s744 = scalar_lea.vmem [#allocation20], %s743
        %p745 = scmp.lt.s32.totalorder %s44, 1
        %s746 = scalar_select %p745, %s44, 1
        %p747 = scmp.lt.s32.totalorder %s45, 0
        %s748 = scalar_select %p747, %s45, 0
        %s749 = sadd.s32 %s748, %s746
        %s750 = smul.addr %s749, 8
        %s751 = scalar_lea.vmem %s0, %s750
        %v753 = vld [vmem:[%s751] sm:$0xff]
        %p754 = scmp.eq.s32.totalorder %s45, 0
        // Predicated region
        $region121: #{tpu_custom_call.1} parent=91 // pred_check
          %p755 = pneg %p754
        $region122: #{tpu_custom_call.1} parent=91 // pred_check_branch
          %757 = sbr.rel (%p755) target = $region124
        $region123: #{tpu_custom_call.1} parent=91 // pred_region
          %v758 = vld [vmem:[%s644] sm:$0xf]
          %v759 = vld [vmem:[%s654] sm:$0xf]
          %v760 = vld [vmem:[%s5] sm:$0xf]
          %v761 = vld [vmem:[%s5 + $0x4] sm:$0xf]
          %v762 = vld [vmem:[%s5 + $0x8] sm:$0xf]
          %v763 = vld [vmem:[%s5 + $0xc] sm:$0xf]
          %v764 = vld [vmem:[#allocation13] sm:$0x1]
          %v766 = vperm.slane %v764, 0
          %v772 = vunpack.c.l.b16 %v760
          %v773 = vunpack.c.l.b16 %v761
          %v774 = vunpack.c.l.b16 %v762
          %v775 = vunpack.c.l.b16 %v763
          %v776 = vpack.c.b16 %v773, %v772
          %v777 = vpack.c.b16 %v775, %v774
          %vm780 = vcmask 261120
          %v782 = vsel %vm780, %v758, 0
          %784 = vmatpush.bf16.msra.mxu0 0
          %785 = vmatpush.bf16.msra.mxu0 0
          %786 = vmatpush.bf16.msra.mxu0 0
          %787 = vmatpush.bf16.msra.mxu0 0
          %788 = vmatpush.bf16.msra.mxu0 0
          %789 = vmatpush.bf16.msra.mxu0 0
          %790 = vmatpush.bf16.msra.mxu0 %v777
          %791 = vmatpush.bf16.msra.mxu0 %v776
          %792 = vmatmul.bf16.gmra.mxu0 %v782
          %v793 = vpop.f32.mrf.mxu0
          %v794 = vadd.f32 %v766, %v793
          %v795 = vpop.f32.mrf.mxu0
          %796 = vdwg.mxu0
          %v797 = vld [vmem:[#allocation16] sm:$0xf]
          %v798 = vld [vmem:[#allocation16 + $0x4] sm:$0xf]
          %v799 = vld [vmem:[#allocation16 + $0x8] sm:$0xf]
          %v800 = vld [vmem:[#allocation16 + $0xc] sm:$0xf]
          %v805 = vunpack.c.l.b16 %v797
          %v806 = vunpack.c.l.b16 %v798
          %v807 = vunpack.c.l.b16 %v799
          %v808 = vunpack.c.l.b16 %v800
          %v809 = vpack.c.b16 %v806, %v805
          %v810 = vpack.c.b16 %v808, %v807
          %v814 = vsel %vm780, %v759, 0
          %816 = vmatpush.bf16.msra.mxu0 0
          %817 = vmatpush.bf16.msra.mxu0 0
          %818 = vmatpush.bf16.msra.mxu0 0
          %819 = vmatpush.bf16.msra.mxu0 0
          %820 = vmatpush.bf16.msra.mxu0 0
          %821 = vmatpush.bf16.msra.mxu0 0
          %822 = vmatpush.bf16.msra.mxu0 %v810
          %823 = vmatpush.bf16.msra.mxu0 %v809
          %824 = vmatmul.bf16.gmra.mxu0 %v814
          %v825 = vpop.f32.mrf.mxu0
          %v826 = vadd.f32 0.0, %v825
          %v827 = vpop.f32.mrf.mxu0
          %828 = vdwg.mxu0
          %v829 = vpack.c.bf16 %v794, %v794
          %vm830 = vcmask 60416
          %831 = vst.msk [vmem:[#allocation3] sm:$0xf] %vm830, %v829
          %833 = vrot.lane.b32.xlu0 %v829, 96
          %v834 = vpop.permute.xlu0 %833
          %836 = vst.msk [vmem:[#allocation4] sm:$0xf] %vm830, %v834
          %v837 = vpack.c.bf16 %v826, %v826
          %838 = vst.msk [vmem:[#allocation5] sm:$0xf] %vm830, %v837
          %840 = vrot.lane.b32.xlu0 %v837, 96
          %v841 = vpop.permute.xlu0 %840
          %843 = vst.msk [vmem:[#allocation6] sm:$0xf] %vm830, %v841
          %844 = vrot.lane.b32.xlu0 %v829, 120
          %v845 = vpop.permute.xlu0 %844
          %s847 = scalar_lea.vmem [#allocation3], 4
          %848 = vst.msk [vmem:[%s847] sm:$0xf] %vm830, %v845
          %849 = vrot.lane.b32.xlu0 %v829, 88
          %v850 = vpop.permute.xlu0 %849
          %s852 = scalar_lea.vmem [#allocation4], 4
          %853 = vst.msk [vmem:[%s852] sm:$0xf] %vm830, %v850
          %854 = vrot.lane.b32.xlu0 %v837, 120
          %v855 = vpop.permute.xlu0 %854
          %s857 = scalar_lea.vmem [#allocation5], 4
          %858 = vst.msk [vmem:[%s857] sm:$0xf] %vm830, %v855
          %859 = vrot.lane.b32.xlu0 %v837, 88
          %v860 = vpop.permute.xlu0 %859
          %s862 = scalar_lea.vmem [#allocation6], 4
          %863 = vst.msk [vmem:[%s862] sm:$0xf] %vm830, %v860
          %864 = vrot.lane.b32.xlu0 %v829, 112
          %v865 = vpop.permute.xlu0 %864
          %s867 = scalar_lea.vmem [#allocation3], 8
          %868 = vst.msk [vmem:[%s867] sm:$0xf] %vm830, %v865
          %869 = vrot.lane.b32.xlu0 %v829, 80
          %v870 = vpop.permute.xlu0 %869
          %s872 = scalar_lea.vmem [#allocation4], 8
          %873 = vst.msk [vmem:[%s872] sm:$0xf] %vm830, %v870
          %874 = vrot.lane.b32.xlu0 %v837, 112
          %v875 = vpop.permute.xlu0 %874
          %s877 = scalar_lea.vmem [#allocation5], 8
          %878 = vst.msk [vmem:[%s877] sm:$0xf] %vm830, %v875
          %879 = vrot.lane.b32.xlu0 %v837, 80
          %v880 = vpop.permute.xlu0 %879
          %s882 = scalar_lea.vmem [#allocation6], 8
          %883 = vst.msk [vmem:[%s882] sm:$0xf] %vm830, %v880
          %884 = vrot.lane.b32.xlu0 %v829, 104
          %v885 = vpop.permute.xlu0 %884
          %s887 = scalar_lea.vmem [#allocation3], 12
          %888 = vst.msk [vmem:[%s887] sm:$0xf] %vm830, %v885
          %889 = vrot.lane.b32.xlu0 %v829, 72
          %v890 = vpop.permute.xlu0 %889
          %s892 = scalar_lea.vmem [#allocation4], 12
          %893 = vst.msk [vmem:[%s892] sm:$0xf] %vm830, %v890
          %894 = vrot.lane.b32.xlu0 %v837, 104
          %v895 = vpop.permute.xlu0 %894
          %s897 = scalar_lea.vmem [#allocation5], 12
          %898 = vst.msk [vmem:[%s897] sm:$0xf] %vm830, %v895
          %899 = vrot.lane.b32.xlu0 %v837, 72
          %v900 = vpop.permute.xlu0 %899
          %s902 = scalar_lea.vmem [#allocation6], 12
          %903 = vst.msk [vmem:[%s902] sm:$0xf] %vm830, %v900
        $region124: #{tpu_custom_call.1} parent=91 // pred_fallthru
          _
        %v904 = vpack.c.bf16 %v753, %v753
        %v905 = vld [vmem:[%s3] sm:$0xf]
        %v906 = vld [vmem:[%s3 + $0x4] sm:$0xf]
        %v907 = vld [vmem:[%s3 + $0x8] sm:$0xf]
        %v908 = vld [vmem:[%s3 + $0xc] sm:$0xf]
        %v909 = vld [vmem:[%s4] sm:$0x1]
        %v911 = vperm.slane %v909, 0
        %v917 = vunpack.c.l.b16 %v905
        %v918 = vunpack.c.l.b16 %v906
        %v919 = vunpack.c.l.b16 %v907
        %v920 = vunpack.c.l.b16 %v908
        %v921 = vpack.c.b16 %v918, %v917
        %v922 = vpack.c.b16 %v920, %v919
        %vm925 = vcmask 261120
        %v927 = vsel %vm925, %v904, 0
        %929 = vmatpush.bf16.msra.mxu0 0
        %930 = vmatpush.bf16.msra.mxu0 0
        %931 = vmatpush.bf16.msra.mxu0 0
        %932 = vmatpush.bf16.msra.mxu0 0
        %933 = vmatpush.bf16.msra.mxu0 0
        %934 = vmatpush.bf16.msra.mxu0 0
        %935 = vmatpush.bf16.msra.mxu0 %v922
        %936 = vmatpush.bf16.msra.mxu0 %v921
        %937 = vmatmul.bf16.gmra.mxu0 %v927
        %v938 = vpop.f32.mrf.mxu0
        %v939 = vadd.f32 %v911, %v938
        %v940 = vpop.f32.mrf.mxu0
        %941 = vdwg.mxu0
        %v942 = vpack.c.bf16 %v939, %v939
        %vm943 = vcmask 60416
        %944 = vst.msk [vmem:[#allocation2] sm:$0xf] %vm943, %v942
        %946 = vrot.lane.b32.xlu0 %v942, 120
        %v947 = vpop.permute.xlu0 %946
        %s949 = scalar_lea.vmem [#allocation2], 4
        %950 = vst.msk [vmem:[%s949] sm:$0xf] %vm943, %v947
        %951 = vrot.lane.b32.xlu0 %v942, 112
        %v952 = vpop.permute.xlu0 %951
        %s954 = scalar_lea.vmem [#allocation2], 8
        %955 = vst.msk [vmem:[%s954] sm:$0xf] %vm943, %v952
        %956 = vrot.lane.b32.xlu0 %v942, 104
        %v957 = vpop.permute.xlu0 %956
        %s959 = scalar_lea.vmem [#allocation2], 12
        %960 = vst.msk [vmem:[%s959] sm:$0xf] %vm943, %v957
        %v961 = vld [vmem:[#allocation2] sm:$0xf]
        %v962 = vld [vmem:[#allocation2 + $0x4] sm:$0xf]
        %v963 = vld [vmem:[#allocation2 + $0x8] sm:$0xf]
        %v964 = vld [vmem:[#allocation2 + $0xc] sm:$0xf]
        %v965 = vld [vmem:[#allocation3] sm:$0xf]
        %v966 = vld [vmem:[#allocation3 + $0x4] sm:$0xf]
        %v967 = vld [vmem:[#allocation3 + $0x8] sm:$0xf]
        %v968 = vld [vmem:[#allocation3 + $0xc] sm:$0xf]
        %vm969 = vcmask 64512
        %v971 = vsel %vm969, %v961, 0
        %v974 = vsel %vm969, %v965, 0
        %976 = vmatpush.bf16.xpose.msra.mxu0 0
        %977 = vmatpush.bf16.xpose.msra.mxu0 0
        %978 = vmatpush.bf16.xpose.msra.mxu0 0
        %979 = vmatpush.bf16.xpose.msra.mxu0 0
        %980 = vmatpush.bf16.xpose.msra.mxu0 0
        %981 = vmatpush.bf16.xpose.msra.mxu0 0
        %982 = vmatpush.bf16.xpose.msra.mxu0 0
        %983 = vmatpush.bf16.xpose.msra.mxu0 %v974
        %984 = vmatmul.bf16.gmra.mxu0 %v971
        %v985 = vpop.f32.mrf.mxu0
        %v986 = vadd.f32 0.0, %v985
        %v987 = vpop.f32.mrf.mxu0
        %988 = vdwg.mxu0
        %v990 = vsel %vm969, %v962, 0
        %v993 = vsel %vm969, %v966, 0
        %995 = vmatpush.bf16.xpose.msra.mxu0 0
        %996 = vmatpush.bf16.xpose.msra.mxu0 0
        %997 = vmatpush.bf16.xpose.msra.mxu0 0
        %998 = vmatpush.bf16.xpose.msra.mxu0 0
        %999 = vmatpush.bf16.xpose.msra.mxu0 0
        %1000 = vmatpush.bf16.xpose.msra.mxu0 0
        %1001 = vmatpush.bf16.xpose.msra.mxu0 0
        %1002 = vmatpush.bf16.xpose.msra.mxu0 %v993
        %1003 = vmatmul.bf16.gmra.mxu0 %v990
        %v1004 = vpop.f32.mrf.mxu0
        %v1005 = vadd.f32 0.0, %v1004
        %v1006 = vpop.f32.mrf.mxu0
        %1007 = vdwg.mxu0
        %v1009 = vsel %vm969, %v963, 0
        %v1012 = vsel %vm969, %v967, 0
        %1014 = vmatpush.bf16.xpose.msra.mxu0 0
        %1015 = vmatpush.bf16.xpose.msra.mxu0 0
        %1016 = vmatpush.bf16.xpose.msra.mxu0 0
        %1017 = vmatpush.bf16.xpose.msra.mxu0 0
        %1018 = vmatpush.bf16.xpose.msra.mxu0 0
        %1019 = vmatpush.bf16.xpose.msra.mxu0 0
        %1020 = vmatpush.bf16.xpose.msra.mxu0 0
        %1021 = vmatpush.bf16.xpose.msra.mxu0 %v1012
        %1022 = vmatmul.bf16.gmra.mxu0 %v1009
        %v1023 = vpop.f32.mrf.mxu0
        %v1024 = vadd.f32 0.0, %v1023
        %v1025 = vpop.f32.mrf.mxu0
        %1026 = vdwg.mxu0
        %v1028 = vsel %vm969, %v964, 0
        %v1031 = vsel %vm969, %v968, 0
        %1033 = vmatpush.bf16.xpose.msra.mxu0 0
        %1034 = vmatpush.bf16.xpose.msra.mxu0 0
        %1035 = vmatpush.bf16.xpose.msra.mxu0 0
        %1036 = vmatpush.bf16.xpose.msra.mxu0 0
        %1037 = vmatpush.bf16.xpose.msra.mxu0 0
        %1038 = vmatpush.bf16.xpose.msra.mxu0 0
        %1039 = vmatpush.bf16.xpose.msra.mxu0 0
        %1040 = vmatpush.bf16.xpose.msra.mxu0 %v1031
        %1041 = vmatmul.bf16.gmra.mxu0 %v1028
        %v1042 = vpop.f32.mrf.mxu0
        %v1043 = vadd.f32 0.0, %v1042
        %v1044 = vpop.f32.mrf.mxu0
        %1045 = vdwg.mxu0
        %v1046 = vmul.f32 %v986, 0.35355338
        %v1047 = vmul.f32 %v1005, 0.35355338
        %v1048 = vmul.f32 %v1024, 0.35355338
        %v1049 = vmul.f32 %v1043, 0.35355338
        %v1050 = vsel %vm969, %v1046, -inf
        %1051 = vmax.xlane.f32.xlu0 %v1050
        %v1052 = vpop.xlane.xlu0 %1051
        %v1053 = vsel %vm969, %v1047, -inf
        %1054 = vmax.xlane.f32.xlu0 %v1053
        %v1055 = vpop.xlane.xlu0 %1054
        %v1056 = vsel %vm969, %v1048, -inf
        %1057 = vmax.xlane.f32.xlu0 %v1056
        %v1058 = vpop.xlane.xlu0 %1057
        %v1059 = vsel %vm969, %v1049, -inf
        %1060 = vmax.xlane.f32.xlu0 %v1059
        %v1061 = vpop.xlane.xlu0 %1060
        %v1062 = vsub.f32 %v1046, %v1052
        %v1063 = vsub.f32 %v1047, %v1055
        %v1064 = vsub.f32 %v1048, %v1058
        %v1065 = vsub.f32 %v1049, %v1061
        %v1066 = vmul.f32 %v1062, 1.442695
        %v1067 = vpow.pop %v1066
        %v1068 = vmul.f32 %v1063, 1.442695
        %v1069 = vpow.pop %v1068
        %v1070 = vmul.f32 %v1064, 1.442695
        %v1071 = vpow.pop %v1070
        %v1072 = vmul.f32 %v1065, 1.442695
        %v1073 = vpow.pop %v1072
        %v1074 = vsel %vm969, %v1067, 0.0
        %1075 = vadd.xlane.f32.xlu0 %v1074
        %v1076 = vpop.xlane.xlu0 %1075
        %v1077 = vsel %vm969, %v1069, 0.0
        %1078 = vadd.xlane.f32.xlu0 %v1077
        %v1079 = vpop.xlane.xlu0 %1078
        %v1080 = vsel %vm969, %v1071, 0.0
        %1081 = vadd.xlane.f32.xlu0 %v1080
        %v1082 = vpop.xlane.xlu0 %1081
        %v1083 = vsel %vm969, %v1073, 0.0
        %1084 = vadd.xlane.f32.xlu0 %v1083
        %v1085 = vpop.xlane.xlu0 %1084
        %v1086 = vrcp.pop %v1076
        %v1087 = vrcp.pop %v1079
        %v1088 = vrcp.pop %v1082
        %v1089 = vrcp.pop %v1085
        %v1090 = vmul.f32 %v1067, %v1086
        %v1091 = vmul.f32 %v1069, %v1087
        %v1092 = vmul.f32 %v1071, %v1088
        %v1093 = vmul.f32 %v1073, %v1089
        %v1094 = vpack.c.bf16 %v1090, %v1090
        %v1095 = vpack.c.bf16 %v1091, %v1091
        %v1096 = vpack.c.bf16 %v1092, %v1092
        %v1097 = vpack.c.bf16 %v1093, %v1093
        %v1098 = vld [vmem:[#allocation4] sm:$0xf]
        %v1099 = vld [vmem:[#allocation4 + $0x4] sm:$0xf]
        %v1100 = vld [vmem:[#allocation4 + $0x8] sm:$0xf]
        %v1101 = vld [vmem:[#allocation4 + $0xc] sm:$0xf]
        %v1103 = vsel %vm969, %v1094, 0
        %vm1105 = vcmask 1043456
        %v1107 = vsel %vm1105, %v1098, 0
        %1109 = vmatpush.bf16.msra.mxu0 0
        %1110 = vmatpush.bf16.msra.mxu0 0
        %1111 = vmatpush.bf16.msra.mxu0 0
        %1112 = vmatpush.bf16.msra.mxu0 0
        %1113 = vmatpush.bf16.msra.mxu0 0
        %1114 = vmatpush.bf16.msra.mxu0 0
        %1115 = vmatpush.bf16.msra.mxu0 0
        %1116 = vmatpush.bf16.msra.mxu0 %v1107
        %1117 = vmatmul.bf16.gmra.mxu0 %v1103
        %v1118 = vpop.f32.mrf.mxu0
        %v1119 = vadd.f32 0.0, %v1118
        %v1120 = vpop.f32.mrf.mxu0
        %1121 = vdwg.mxu0
        %v1123 = vsel %vm969, %v1095, 0
        %v1126 = vsel %vm1105, %v1099, 0
        %1128 = vmatpush.bf16.msra.mxu0 0
        %1129 = vmatpush.bf16.msra.mxu0 0
        %1130 = vmatpush.bf16.msra.mxu0 0
        %1131 = vmatpush.bf16.msra.mxu0 0
        %1132 = vmatpush.bf16.msra.mxu0 0
        %1133 = vmatpush.bf16.msra.mxu0 0
        %1134 = vmatpush.bf16.msra.mxu0 0
        %1135 = vmatpush.bf16.msra.mxu0 %v1126
        %1136 = vmatmul.bf16.gmra.mxu0 %v1123
        %v1137 = vpop.f32.mrf.mxu0
        %v1138 = vadd.f32 0.0, %v1137
        %v1139 = vpop.f32.mrf.mxu0
        %1140 = vdwg.mxu0
        %v1142 = vsel %vm969, %v1096, 0
        %v1145 = vsel %vm1105, %v1100, 0
        %1147 = vmatpush.bf16.msra.mxu0 0
        %1148 = vmatpush.bf16.msra.mxu0 0
        %1149 = vmatpush.bf16.msra.mxu0 0
        %1150 = vmatpush.bf16.msra.mxu0 0
        %1151 = vmatpush.bf16.msra.mxu0 0
        %1152 = vmatpush.bf16.msra.mxu0 0
        %1153 = vmatpush.bf16.msra.mxu0 0
        %1154 = vmatpush.bf16.msra.mxu0 %v1145
        %1155 = vmatmul.bf16.gmra.mxu0 %v1142
        %v1156 = vpop.f32.mrf.mxu0
        %v1157 = vadd.f32 0.0, %v1156
        %v1158 = vpop.f32.mrf.mxu0
        %1159 = vdwg.mxu0
        %v1161 = vsel %vm969, %v1097, 0
        %v1164 = vsel %vm1105, %v1101, 0
        %1166 = vmatpush.bf16.msra.mxu0 0
        %1167 = vmatpush.bf16.msra.mxu0 0
        %1168 = vmatpush.bf16.msra.mxu0 0
        %1169 = vmatpush.bf16.msra.mxu0 0
        %1170 = vmatpush.bf16.msra.mxu0 0
        %1171 = vmatpush.bf16.msra.mxu0 0
        %1172 = vmatpush.bf16.msra.mxu0 0
        %1173 = vmatpush.bf16.msra.mxu0 %v1164
        %1174 = vmatmul.bf16.gmra.mxu0 %v1161
        %v1175 = vpop.f32.mrf.mxu0
        %v1176 = vadd.f32 0.0, %v1175
        %v1177 = vpop.f32.mrf.mxu0
        %1178 = vdwg.mxu0
        %v1179 = vpack.c.bf16 %v1119, %v1119
        %1180 = vst.msk [vmem:[#allocation7] sm:$0xf] %vm943, %v1179
        %v1181 = vpack.c.bf16 %v1138, %v1138
        %1183 = vrot.lane.b32.xlu0 %v1181, 8
        %v1184 = vpop.permute.xlu0 %1183
        %vm1186 = vcmask 126016
        %1187 = vst.msk [vmem:[#allocation7] sm:$0xf] %vm1186, %v1184
        %v1188 = vpack.c.bf16 %v1157, %v1157
        %1190 = vrot.lane.b32.xlu0 %v1188, 16
        %v1191 = vpop.permute.xlu0 %1190
        %vm1193 = vcmask 191616
        %1194 = vst.msk [vmem:[#allocation7] sm:$0xf] %vm1193, %v1191
        %v1195 = vpack.c.bf16 %v1176, %v1176
        %1197 = vrot.lane.b32.xlu0 %v1195, 24
        %v1198 = vpop.permute.xlu0 %1197
        %vm1200 = vcmask 257216
        %1201 = vst.msk [vmem:[#allocation7] sm:$0xf] %vm1200, %v1198
        %v1202 = vld [vmem:[#allocation7] sm:$0xf]
        %v1203 = vld [vmem:[%s7] sm:$0xf]
        %v1204 = vld [vmem:[%s7 + $0x4] sm:$0xf]
        %v1205 = vld [vmem:[%s7 + $0x8] sm:$0xf]
        %v1206 = vld [vmem:[%s7 + $0xc] sm:$0xf]
        %v1207 = vld [vmem:[#allocation14] sm:$0x1]
        %v1209 = vperm.slane %v1207, 0
        %v1215 = vunpack.c.l.b16 %v1203
        %v1216 = vunpack.c.l.b16 %v1204
        %v1217 = vunpack.c.l.b16 %v1205
        %v1218 = vunpack.c.l.b16 %v1206
        %v1219 = vpack.c.b16 %v1216, %v1215
        %v1220 = vpack.c.b16 %v1218, %v1217
        %v1224 = vsel %vm925, %v1202, 0
        %1226 = vmatpush.bf16.msra.mxu0 0
        %1227 = vmatpush.bf16.msra.mxu0 0
        %1228 = vmatpush.bf16.msra.mxu0 0
        %1229 = vmatpush.bf16.msra.mxu0 0
        %1230 = vmatpush.bf16.msra.mxu0 0
        %1231 = vmatpush.bf16.msra.mxu0 0
        %1232 = vmatpush.bf16.msra.mxu0 %v1220
        %1233 = vmatpush.bf16.msra.mxu0 %v1219
        %1234 = vmatmul.bf16.gmra.mxu0 %v1224
        %v1235 = vpop.f32.mrf.mxu0
        %v1236 = vadd.f32 %v1209, %v1235
        %v1237 = vpop.f32.mrf.mxu0
        %1238 = vdwg.mxu0
        %v1239 = vadd.f32 %v753, %v1236
        %v1240 = vld [vmem:[%s17] sm:$0x1]
        %v1241 = vld [vmem:[%s17 + $0x1] sm:$0x1]
        %v1242 = vsel %vm925, %v1239, 0.0
        %1243 = vadd.xlane.f32.xlu0 %v1242
        %v1244 = vpop.xlane.xlu0 %1243
        %v1245 = vrcp.pop 32.0
        %v1246 = vmul.f32 32.0, %v1245
        %v1247 = vsub.f32 1.0, %v1246
        %v1248 = vmul.f32 %v1245, %v1247
        %v1249 = vadd.f32 %v1245, %v1248
        %vm1250 = vweird.f32 %v1245
        %v1251 = vsel %vm1250, %v1245, %v1249
        %v1252 = vmul.f32 %v1244, %v1251
        %v1253 = vmul.f32 %v1239, %v1239
        %v1254 = vsel %vm925, %v1253, 0.0
        %1255 = vadd.xlane.f32.xlu0 %v1254
        %v1256 = vpop.xlane.xlu0 %1255
        %v1257 = vmul.f32 %v1256, %v1251
        %v1258 = vmul.f32 %v1252, %v1252
        %v1259 = vsub.f32 %v1257, %v1258
        %v1260 = vsub.f32 %v1239, %v1252
        %v1261 = vadd.f32 %v1259, 1e-05
        %v1262 = vrsqrt.pop %v1261
        %v1263 = vmul.f32 %v1262, %v1261
        %v1264 = vmul.f32 %v1263, %v1262
        %v1265 = vmul.f32 0.5, %v1264
        %v1266 = vsub.f32 1.5, %v1265
        %v1267 = vmul.f32 %v1262, %v1266
        %vm1268 = vweird.f32 %v1261
        %vm1269 = vweird.f32 %v1262
        %vm1270 = vmor %vm1268, %vm1269
        %v1271 = vsel %vm1270, %v1262, %v1267
        %v1272 = vmul.f32 %v1260, %v1271
        %v1273 = vperm.slane %v1240, 0
        %v1274 = vmul.f32 %v1272, %v1273
        %v1275 = vperm.slane %v1241, 0
        %v1276 = vadd.f32 %v1274, %v1275
        %v1277 = vpack.c.bf16 %v1276, %v1276
        %v1278 = vld [vmem:[%s9] sm:$0xf]
        %v1279 = vld [vmem:[%s9 + $0x4] sm:$0xf]
        %v1280 = vld [vmem:[%s9 + $0x8] sm:$0xf]
        %v1281 = vld [vmem:[%s9 + $0xc] sm:$0xf]
        %v1286 = vunpack.c.l.b16 %v1278
        %v1287 = vunpack.c.l.b16 %v1279
        %v1288 = vunpack.c.l.b16 %v1280
        %v1289 = vunpack.c.l.b16 %v1281
        %v1290 = vpack.c.b16 %v1287, %v1286
        %v1291 = vpack.c.b16 %v1289, %v1288
        %v1295 = vsel %vm925, %v1277, 0
        %1297 = vmatpush.bf16.msra.mxu0 0
        %1298 = vmatpush.bf16.msra.mxu0 0
        %1299 = vmatpush.bf16.msra.mxu0 0
        %1300 = vmatpush.bf16.msra.mxu0 0
        %1301 = vmatpush.bf16.msra.mxu0 0
        %1302 = vmatpush.bf16.msra.mxu0 0
        %1303 = vmatpush.bf16.msra.mxu0 %v1291
        %1304 = vmatpush.bf16.msra.mxu0 %v1290
        %1305 = vmatmul.bf16.gmra.mxu0 %v1295
        %v1306 = vpop.f32.mrf.mxu0
        %v1307 = vadd.f32 0.0, %v1306
        %v1308 = vpop.f32.mrf.mxu0
        %1309 = vdwg.mxu0
        %v1310 = vpack.c.bf16 %v1307, %v1307
        %1311 = vst.msk [vmem:[#allocation2] sm:$0xf] %vm943, %v1310
        %1313 = vrot.lane.b32.xlu0 %v1310, 120
        %v1314 = vpop.permute.xlu0 %1313
        %1316 = vst.msk [vmem:[%s949] sm:$0xf] %vm943, %v1314
        %1317 = vrot.lane.b32.xlu0 %v1310, 112
        %v1318 = vpop.permute.xlu0 %1317
        %1320 = vst.msk [vmem:[%s954] sm:$0xf] %vm943, %v1318
        %1321 = vrot.lane.b32.xlu0 %v1310, 104
        %v1322 = vpop.permute.xlu0 %1321
        %1324 = vst.msk [vmem:[%s959] sm:$0xf] %vm943, %v1322
        %v1325 = vld [vmem:[#allocation2] sm:$0xf]
        %v1326 = vld [vmem:[#allocation2 + $0x4] sm:$0xf]
        %v1327 = vld [vmem:[#allocation2 + $0x8] sm:$0xf]
        %v1328 = vld [vmem:[#allocation2 + $0xc] sm:$0xf]
        %v1329 = vld [vmem:[#allocation5] sm:$0xf]
        %v1330 = vld [vmem:[#allocation5 + $0x4] sm:$0xf]
        %v1331 = vld [vmem:[#allocation5 + $0x8] sm:$0xf]
        %v1332 = vld [vmem:[#allocation5 + $0xc] sm:$0xf]
        %v1334 = vsel %vm969, %v1325, 0
        %v1337 = vsel %vm969, %v1329, 0
        %1339 = vmatpush.bf16.xpose.msra.mxu0 0
        %1340 = vmatpush.bf16.xpose.msra.mxu0 0
        %1341 = vmatpush.bf16.xpose.msra.mxu0 0
        %1342 = vmatpush.bf16.xpose.msra.mxu0 0
        %1343 = vmatpush.bf16.xpose.msra.mxu0 0
        %1344 = vmatpush.bf16.xpose.msra.mxu0 0
        %1345 = vmatpush.bf16.xpose.msra.mxu0 0
        %1346 = vmatpush.bf16.xpose.msra.mxu0 %v1337
        %1347 = vmatmul.bf16.gmra.mxu0 %v1334
        %v1348 = vpop.f32.mrf.mxu0
        %v1349 = vadd.f32 0.0, %v1348
        %v1350 = vpop.f32.mrf.mxu0
        %1351 = vdwg.mxu0
        %v1353 = vsel %vm969, %v1326, 0
        %v1356 = vsel %vm969, %v1330, 0
        %1358 = vmatpush.bf16.xpose.msra.mxu0 0
        %1359 = vmatpush.bf16.xpose.msra.mxu0 0
        %1360 = vmatpush.bf16.xpose.msra.mxu0 0
        %1361 = vmatpush.bf16.xpose.msra.mxu0 0
        %1362 = vmatpush.bf16.xpose.msra.mxu0 0
        %1363 = vmatpush.bf16.xpose.msra.mxu0 0
        %1364 = vmatpush.bf16.xpose.msra.mxu0 0
        %1365 = vmatpush.bf16.xpose.msra.mxu0 %v1356
        %1366 = vmatmul.bf16.gmra.mxu0 %v1353
        %v1367 = vpop.f32.mrf.mxu0
        %v1368 = vadd.f32 0.0, %v1367
        %v1369 = vpop.f32.mrf.mxu0
        %1370 = vdwg.mxu0
        %v1372 = vsel %vm969, %v1327, 0
        %v1375 = vsel %vm969, %v1331, 0
        %1377 = vmatpush.bf16.xpose.msra.mxu0 0
        %1378 = vmatpush.bf16.xpose.msra.mxu0 0
        %1379 = vmatpush.bf16.xpose.msra.mxu0 0
        %1380 = vmatpush.bf16.xpose.msra.mxu0 0
        %1381 = vmatpush.bf16.xpose.msra.mxu0 0
        %1382 = vmatpush.bf16.xpose.msra.mxu0 0
        %1383 = vmatpush.bf16.xpose.msra.mxu0 0
        %1384 = vmatpush.bf16.xpose.msra.mxu0 %v1375
        %1385 = vmatmul.bf16.gmra.mxu0 %v1372
        %v1386 = vpop.f32.mrf.mxu0
        %v1387 = vadd.f32 0.0, %v1386
        %v1388 = vpop.f32.mrf.mxu0
        %1389 = vdwg.mxu0
        %v1391 = vsel %vm969, %v1328, 0
        %v1394 = vsel %vm969, %v1332, 0
        %1396 = vmatpush.bf16.xpose.msra.mxu0 0
        %1397 = vmatpush.bf16.xpose.msra.mxu0 0
        %1398 = vmatpush.bf16.xpose.msra.mxu0 0
        %1399 = vmatpush.bf16.xpose.msra.mxu0 0
        %1400 = vmatpush.bf16.xpose.msra.mxu0 0
        %1401 = vmatpush.bf16.xpose.msra.mxu0 0
        %1402 = vmatpush.bf16.xpose.msra.mxu0 0
        %1403 = vmatpush.bf16.xpose.msra.mxu0 %v1394
        %1404 = vmatmul.bf16.gmra.mxu0 %v1391
        %v1405 = vpop.f32.mrf.mxu0
        %v1406 = vadd.f32 0.0, %v1405
        %v1407 = vpop.f32.mrf.mxu0
        %1408 = vdwg.mxu0
        %v1409 = vmul.f32 %v1349, 0.35355338
        %v1410 = vmul.f32 %v1368, 0.35355338
        %v1411 = vmul.f32 %v1387, 0.35355338
        %v1412 = vmul.f32 %v1406, 0.35355338
        %v1413 = vsel %vm969, %v1409, -inf
        %v1414 = vsel %vm969, %v1410, -inf
        %v1415 = vsel %vm969, %v1411, -inf
        %v1416 = vsel %vm969, %v1412, -inf
        %v1417 = vmax.f32 %v1413, %v1414
        %v1418 = vmax.f32 %v1415, %v1416
        %v1419 = vmax.f32 %v1417, %v1418
        %v1420 = vsub.f32 %v1409, %v1419
        %v1421 = vsub.f32 %v1410, %v1419
        %v1422 = vsub.f32 %v1411, %v1419
        %v1423 = vsub.f32 %v1412, %v1419
        %v1424 = vmul.f32 %v1420, 1.442695
        %v1425 = vpow.pop %v1424
        %v1426 = vmul.f32 %v1421, 1.442695
        %v1427 = vpow.pop %v1426
        %v1428 = vmul.f32 %v1422, 1.442695
        %v1429 = vpow.pop %v1428
        %v1430 = vmul.f32 %v1423, 1.442695
        %v1431 = vpow.pop %v1430
        %v1432 = vsel %vm969, %v1425, 0.0
        %v1433 = vsel %vm969, %v1427, 0.0
        %v1434 = vadd.f32 %v1432, %v1433
        %v1435 = vsel %vm969, %v1429, 0.0
        %v1436 = vadd.f32 %v1434, %v1435
        %v1437 = vsel %vm969, %v1431, 0.0
        %v1438 = vadd.f32 %v1436, %v1437
        %v1439 = vrcp.pop %v1438
        %v1440 = vmul.f32 %v1425, %v1439
        %v1441 = vmul.f32 %v1427, %v1439
        %v1442 = vmul.f32 %v1429, %v1439
        %v1443 = vmul.f32 %v1431, %v1439
        %v1444 = vpack.c.bf16 %v1440, %v1440
        %v1445 = vpack.c.bf16 %v1441, %v1441
        %v1446 = vpack.c.bf16 %v1442, %v1442
        %v1447 = vpack.c.bf16 %v1443, %v1443
        %v1448 = vld [vmem:[#allocation6] sm:$0xf]
        %v1449 = vld [vmem:[#allocation6 + $0x4] sm:$0xf]
        %v1450 = vld [vmem:[#allocation6 + $0x8] sm:$0xf]
        %v1451 = vld [vmem:[#allocation6 + $0xc] sm:$0xf]
        %v1453 = vsel %vm969, %v1444, 0
        %v1456 = vsel %vm1105, %v1448, 0
        %1458 = vmatpush.bf16.msra.mxu0 0
        %1459 = vmatpush.bf16.msra.mxu0 0
        %1460 = vmatpush.bf16.msra.mxu0 0
        %1461 = vmatpush.bf16.msra.mxu0 0
        %1462 = vmatpush.bf16.msra.mxu0 0
        %1463 = vmatpush.bf16.msra.mxu0 0
        %1464 = vmatpush.bf16.msra.mxu0 0
        %1465 = vmatpush.bf16.msra.mxu0 %v1456
        %1466 = vmatmul.bf16.gmra.mxu0 %v1453
        %v1467 = vpop.f32.mrf.mxu0
        %v1468 = vadd.f32 0.0, %v1467
        %v1469 = vpop.f32.mrf.mxu0
        %1470 = vdwg.mxu0
        %v1472 = vsel %vm969, %v1445, 0
        %v1475 = vsel %vm1105, %v1449, 0
        %1477 = vmatpush.bf16.msra.mxu0 0
        %1478 = vmatpush.bf16.msra.mxu0 0
        %1479 = vmatpush.bf16.msra.mxu0 0
        %1480 = vmatpush.bf16.msra.mxu0 0
        %1481 = vmatpush.bf16.msra.mxu0 0
        %1482 = vmatpush.bf16.msra.mxu0 0
        %1483 = vmatpush.bf16.msra.mxu0 0
        %1484 = vmatpush.bf16.msra.mxu0 %v1475
        %1485 = vmatmul.bf16.gmra.mxu0 %v1472
        %v1486 = vpop.f32.mrf.mxu0
        %v1487 = vadd.f32 0.0, %v1486
        %v1488 = vpop.f32.mrf.mxu0
        %1489 = vdwg.mxu0
        %v1491 = vsel %vm969, %v1446, 0
        %v1494 = vsel %vm1105, %v1450, 0
        %1496 = vmatpush.bf16.msra.mxu0 0
        %1497 = vmatpush.bf16.msra.mxu0 0
        %1498 = vmatpush.bf16.msra.mxu0 0
        %1499 = vmatpush.bf16.msra.mxu0 0
        %1500 = vmatpush.bf16.msra.mxu0 0
        %1501 = vmatpush.bf16.msra.mxu0 0
        %1502 = vmatpush.bf16.msra.mxu0 0
        %1503 = vmatpush.bf16.msra.mxu0 %v1494
        %1504 = vmatmul.bf16.gmra.mxu0 %v1491
        %v1505 = vpop.f32.mrf.mxu0
        %v1506 = vadd.f32 0.0, %v1505
        %v1507 = vpop.f32.mrf.mxu0
        %1508 = vdwg.mxu0
        %v1510 = vsel %vm969, %v1447, 0
        %v1513 = vsel %vm1105, %v1451, 0
        %1515 = vmatpush.bf16.msra.mxu0 0
        %1516 = vmatpush.bf16.msra.mxu0 0
        %1517 = vmatpush.bf16.msra.mxu0 0
        %1518 = vmatpush.bf16.msra.mxu0 0
        %1519 = vmatpush.bf16.msra.mxu0 0
        %1520 = vmatpush.bf16.msra.mxu0 0
        %1521 = vmatpush.bf16.msra.mxu0 0
        %1522 = vmatpush.bf16.msra.mxu0 %v1513
        %1523 = vmatmul.bf16.gmra.mxu0 %v1510
        %v1524 = vpop.f32.mrf.mxu0
        %v1525 = vadd.f32 0.0, %v1524
        %v1526 = vpop.f32.mrf.mxu0
        %1527 = vdwg.mxu0
        %v1528 = vpack.c.bf16 %v1468, %v1468
        %1529 = vst.msk [vmem:[#allocation7] sm:$0xf] %vm943, %v1528
        %v1530 = vpack.c.bf16 %v1487, %v1487
        %1532 = vrot.lane.b32.xlu0 %v1530, 8
        %v1533 = vpop.permute.xlu0 %1532
        %1535 = vst.msk [vmem:[#allocation7] sm:$0xf] %vm1186, %v1533
        %v1536 = vpack.c.bf16 %v1506, %v1506
        %1538 = vrot.lane.b32.xlu0 %v1536, 16
        %v1539 = vpop.permute.xlu0 %1538
        %1541 = vst.msk [vmem:[#allocation7] sm:$0xf] %vm1193, %v1539
        %v1542 = vpack.c.bf16 %v1525, %v1525
        %1544 = vrot.lane.b32.xlu0 %v1542, 24
        %v1545 = vpop.permute.xlu0 %1544
        %1547 = vst.msk [vmem:[#allocation7] sm:$0xf] %vm1200, %v1545
        %v1548 = vld [vmem:[#allocation7] sm:$0xf]
        %v1549 = vld [vmem:[#allocation17] sm:$0xf]
        %v1550 = vld [vmem:[#allocation17 + $0x4] sm:$0xf]
        %v1551 = vld [vmem:[#allocation17 + $0x8] sm:$0xf]
        %v1552 = vld [vmem:[#allocation17 + $0xc] sm:$0xf]
        %v1553 = vld [vmem:[%s12] sm:$0x1]
        %v1555 = vperm.slane %v1553, 0
        %v1561 = vunpack.c.l.b16 %v1549
        %v1562 = vunpack.c.l.b16 %v1550
        %v1563 = vunpack.c.l.b16 %v1551
        %v1564 = vunpack.c.l.b16 %v1552
        %v1565 = vpack.c.b16 %v1562, %v1561
        %v1566 = vpack.c.b16 %v1564, %v1563
        %v1570 = vsel %vm925, %v1548, 0
        %1572 = vmatpush.bf16.msra.mxu0 0
        %1573 = vmatpush.bf16.msra.mxu0 0
        %1574 = vmatpush.bf16.msra.mxu0 0
        %1575 = vmatpush.bf16.msra.mxu0 0
        %1576 = vmatpush.bf16.msra.mxu0 0
        %1577 = vmatpush.bf16.msra.mxu0 0
        %1578 = vmatpush.bf16.msra.mxu0 %v1566
        %1579 = vmatpush.bf16.msra.mxu0 %v1565
        %1580 = vmatmul.bf16.gmra.mxu0 %v1570
        %v1581 = vpop.f32.mrf.mxu0
        %v1582 = vadd.f32 %v1555, %v1581
        %v1583 = vpop.f32.mrf.mxu0
        %1584 = vdwg.mxu0
        %v1585 = vadd.f32 %v1276, %v1582
        %v1586 = vld [vmem:[%s17 + $0x2] sm:$0x1]
        %v1587 = vld [vmem:[%s17 + $0x3] sm:$0x1]
        %v1588 = vsel %vm925, %v1585, 0.0
        %1589 = vadd.xlane.f32.xlu0 %v1588
        %v1590 = vpop.xlane.xlu0 %1589
        %v1591 = vmul.f32 %v1590, %v1251
        %v1592 = vmul.f32 %v1585, %v1585
        %v1593 = vsel %vm925, %v1592, 0.0
        %1594 = vadd.xlane.f32.xlu0 %v1593
        %v1595 = vpop.xlane.xlu0 %1594
        %v1596 = vmul.f32 %v1595, %v1251
        %v1597 = vmul.f32 %v1591, %v1591
        %v1598 = vsub.f32 %v1596, %v1597
        %v1599 = vsub.f32 %v1585, %v1591
        %v1600 = vadd.f32 %v1598, 1e-05
        %v1601 = vrsqrt.pop %v1600
        %v1602 = vmul.f32 %v1601, %v1600
        %v1603 = vmul.f32 %v1602, %v1601
        %v1604 = vmul.f32 0.5, %v1603
        %v1605 = vsub.f32 1.5, %v1604
        %v1606 = vmul.f32 %v1601, %v1605
        %vm1607 = vweird.f32 %v1600
        %vm1608 = vweird.f32 %v1601
        %vm1609 = vmor %vm1607, %vm1608
        %v1610 = vsel %vm1609, %v1601, %v1606
        %v1611 = vmul.f32 %v1599, %v1610
        %v1612 = vperm.slane %v1586, 0
        %v1613 = vmul.f32 %v1611, %v1612
        %v1614 = vperm.slane %v1587, 0
        %v1615 = vadd.f32 %v1613, %v1614
        %v1616 = vpack.c.bf16 %v1615, %v1615
        %v1617 = vld [vmem:[#allocation19] sm:$0xf]
        %v1618 = vld [vmem:[#allocation19 + $0x4] sm:$0xf]
        %v1619 = vld [vmem:[#allocation19 + $0x8] sm:$0xf]
        %v1620 = vld [vmem:[#allocation19 + $0xc] sm:$0xf]
        %v1621 = vld [vmem:[%s14] sm:$0x1]
        %v1623 = vperm.slane %v1621, 0
        %v1629 = vunpack.c.l.b16 %v1617
        %v1630 = vunpack.c.l.b16 %v1618
        %v1631 = vunpack.c.l.b16 %v1619
        %v1632 = vunpack.c.l.b16 %v1620
        %v1633 = vpack.c.b16 %v1630, %v1629
        %v1634 = vpack.c.b16 %v1632, %v1631
        %v1638 = vsel %vm925, %v1616, 0
        %1640 = vmatpush.bf16.msra.mxu0 0
        %1641 = vmatpush.bf16.msra.mxu0 0
        %1642 = vmatpush.bf16.msra.mxu0 0
        %1643 = vmatpush.bf16.msra.mxu0 0
        %1644 = vmatpush.bf16.msra.mxu0 0
        %1645 = vmatpush.bf16.msra.mxu0 0
        %1646 = vmatpush.bf16.msra.mxu0 %v1634
        %1647 = vmatpush.bf16.msra.mxu0 %v1633
        %1648 = vmatmul.bf16.gmra.mxu0 %v1638
        %v1649 = vpop.f32.mrf.mxu0
        %v1650 = vadd.f32 %v1623, %v1649
        %v1651 = vpop.f32.mrf.mxu0
        %1652 = vdwg.mxu0
        %v1653 = vmax.f32 %v1650, 0.0
        %v1654 = vpack.c.bf16 %v1653, %v1653
        %v1655 = vld [vmem:[%s15] sm:$0xf]
        %v1656 = vld [vmem:[%s15 + $0x4] sm:$0xf]
        %v1657 = vld [vmem:[%s15 + $0x8] sm:$0xf]
        %v1658 = vld [vmem:[%s15 + $0xc] sm:$0xf]
        %v1659 = vld [vmem:[%s15 + $0x10] sm:$0xf]
        %v1660 = vld [vmem:[%s15 + $0x14] sm:$0xf]
        %v1661 = vld [vmem:[%s15 + $0x18] sm:$0xf]
        %v1662 = vld [vmem:[%s15 + $0x1c] sm:$0xf]
        %v1663 = vld [vmem:[%s15 + $0x20] sm:$0xf]
        %v1664 = vld [vmem:[%s15 + $0x24] sm:$0xf]
        %v1665 = vld [vmem:[%s15 + $0x28] sm:$0xf]
        %v1666 = vld [vmem:[%s15 + $0x2c] sm:$0xf]
        %v1667 = vld [vmem:[%s15 + $0x30] sm:$0xf]
        %v1668 = vld [vmem:[%s15 + $0x34] sm:$0xf]
        %v1669 = vld [vmem:[%s15 + $0x38] sm:$0xf]
        %v1670 = vld [vmem:[%s15 + $0x3c] sm:$0xf]
        %v1671 = vld [vmem:[%s16] sm:$0x1]
        %v1673 = vperm.slane %v1671, 0
        %v1691 = vunpack.c.l.b16 %v1655
        %v1692 = vunpack.c.l.b16 %v1656
        %v1693 = vunpack.c.l.b16 %v1657
        %v1694 = vunpack.c.l.b16 %v1658
        %v1695 = vunpack.c.l.b16 %v1659
        %v1696 = vunpack.c.l.b16 %v1660
        %v1697 = vunpack.c.l.b16 %v1661
        %v1698 = vunpack.c.l.b16 %v1662
        %v1699 = vunpack.c.l.b16 %v1663
        %v1700 = vunpack.c.l.b16 %v1664
        %v1701 = vunpack.c.l.b16 %v1665
        %v1702 = vunpack.c.l.b16 %v1666
        %v1703 = vunpack.c.l.b16 %v1667
        %v1704 = vunpack.c.l.b16 %v1668
        %v1705 = vunpack.c.l.b16 %v1669
        %v1706 = vunpack.c.l.b16 %v1670
        %v1707 = vpack.c.b16 %v1692, %v1691
        %v1708 = vpack.c.b16 %v1694, %v1693
        %v1709 = vpack.c.b16 %v1696, %v1695
        %v1710 = vpack.c.b16 %v1698, %v1697
        %v1711 = vpack.c.b16 %v1700, %v1699
        %v1712 = vpack.c.b16 %v1702, %v1701
        %v1713 = vpack.c.b16 %v1704, %v1703
        %v1714 = vpack.c.b16 %v1706, %v1705
        %1723 = vmatpush.bf16.msra.mxu0 %v1714
        %1724 = vmatpush.bf16.msra.mxu0 %v1713
        %1725 = vmatpush.bf16.msra.mxu0 %v1712
        %1726 = vmatpush.bf16.msra.mxu0 %v1711
        %1727 = vmatpush.bf16.msra.mxu0 %v1710
        %1728 = vmatpush.bf16.msra.mxu0 %v1709
        %1729 = vmatpush.bf16.msra.mxu0 %v1708
        %1730 = vmatpush.bf16.msra.mxu0 %v1707
        %1731 = vmatmul.bf16.gmra.mxu0 %v1654
        %v1732 = vpop.f32.mrf.mxu0
        %v1733 = vadd.f32 %v1673, %v1732
        %v1734 = vpop.f32.mrf.mxu0
        %1735 = vdwg.mxu0
        %v1736 = vadd.f32 %v1615, %v1733
        %v1737 = vld [vmem:[%s17 + $0x4] sm:$0x1]
        %v1738 = vld [vmem:[%s17 + $0x5] sm:$0x1]
        %v1739 = vsel %vm925, %v1736, 0.0
        %1740 = vadd.xlane.f32.xlu0 %v1739
        %v1741 = vpop.xlane.xlu0 %1740
        %v1742 = vmul.f32 %v1741, %v1251
        %v1743 = vmul.f32 %v1736, %v1736
        %v1744 = vsel %vm925, %v1743, 0.0
        %1745 = vadd.xlane.f32.xlu0 %v1744
        %v1746 = vpop.xlane.xlu0 %1745
        %v1747 = vmul.f32 %v1746, %v1251
        %v1748 = vmul.f32 %v1742, %v1742
        %v1749 = vsub.f32 %v1747, %v1748
        %v1750 = vsub.f32 %v1736, %v1742
        %v1751 = vadd.f32 %v1749, 1e-05
        %v1752 = vrsqrt.pop %v1751
        %v1753 = vmul.f32 %v1752, %v1751
        %v1754 = vmul.f32 %v1753, %v1752
        %v1755 = vmul.f32 0.5, %v1754
        %v1756 = vsub.f32 1.5, %v1755
        %v1757 = vmul.f32 %v1752, %v1756
        %vm1758 = vweird.f32 %v1751
        %vm1759 = vweird.f32 %v1752
        %vm1760 = vmor %vm1758, %vm1759
        %v1761 = vsel %vm1760, %v1752, %v1757
        %v1762 = vmul.f32 %v1750, %v1761
        %v1763 = vperm.slane %v1737, 0
        %v1764 = vmul.f32 %v1762, %v1763
        %v1765 = vperm.slane %v1738, 0
        %v1766 = vadd.f32 %v1764, %v1765
        %1767 = vst.msk [vmem:[%s744] sm:$0xff] %vm925, %v1766
        %s1768 = sand.u32 %s457, 1
        %s1769 = scalar_lea.sflag [#allocation10], %s1768
        %s1770 = sand.u32 %s457, 1
        %s1771 = smul.addr %s1770, 8
        %s1772 = scalar_lea.vmem [#allocation20], %s1771
        // Predicated region
        $region125: #{tpu_custom_call.1} parent=91 // pred_check
          %p1773 = pneg %p467
        $region126: #{tpu_custom_call.1} parent=91 // pred_check_branch
          %1775 = sbr.rel (%p1773) target = $region128
        $region127: #{tpu_custom_call.1} parent=91 // pred_region
          %1777 = vsyncadd %s1769, 0
          %s1778 = sadd.s32 %s45, %s44
          %s1779 = smul.addr %s1778, 8
          %s1780 = scalar_lea.hbm %s18, %s1779
          %s1782 = sshll.u32 %s1772, 4
          %s1783 = int_to_ptr.vmem [resolvable:$true] %s1782
          %s1784 = sshll.u32 %s1780, 4
          %s1785 = int_to_ptr.hbm [resolvable:$true] %s1784
          %1787 = dma.vmem_to_hbm [thread:$0]  %s1783, 128, %s1785, %s1769
        $region128: #{tpu_custom_call.1} parent=91 // pred_fallthru
          _
      $region92: #{tpu_custom_call.1} parent=5 // pred_fallthru
        _
      %p1788 = scmp.le.s32.totalorder 2, %s35
      // Predicated region
      $region129: #{tpu_custom_call.1} parent=5 // pred_check
        %p1789 = pneg %p1788
      $region130: #{tpu_custom_call.1} parent=5 // pred_check_branch
        %1791 = sbr.rel (%p1789) target = $region132
      $region131: #{tpu_custom_call.1} parent=5 // pred_region
        %s1792 = ssub.s32 %s35, 2
        // Predicated region
        $region133: #{tpu_custom_call.1} parent=131 // pred_check
          %p1793 = pneg %p473
        $region134: #{tpu_custom_call.1} parent=131 // pred_check_branch
          %1795 = sbr.rel (%p1793) target = $region136
        $region135: #{tpu_custom_call.1} parent=131 // pred_region
          %s1796 = sand.u32 %s458, 1
          %s1797 = scalar_lea.sflag [#allocation10], %s1796
          %s1798 = sand.u32 %s458, 1
          %s1799 = smul.addr %s1798, 8
          %s1800 = scalar_lea.vmem [#allocation20], %s1799
          %1802 = dma.done %s1797, 128
        $region136: #{tpu_custom_call.1} parent=131 // pred_fallthru
          _
      $region132: #{tpu_custom_call.1} parent=5 // pred_fallthru
        _
    $region6: #{tpu_custom_call.1} parent=1 // loop_footer
      %s39 = sadd.s32 1, %s35
    $region7: #{tpu_custom_call.1} parent=1 // loop_footer_branch
      %34 = sbr.rel target = $region3
    $region8: #{tpu_custom_call.1} parent=1 // loop_exit
      _
    %1803 = vsyncpa [#allocation9], 1
    %s1804 = scalar_lea.sflag [#allocation9], 1
    %1805 = vsyncpa %s1804, 1
    %1806 = vsyncpa [#allocation12], 1
    %s1807 = scalar_lea.sflag [#allocation12], 1
    %1808 = vsyncpa %s1807, 1
    %1809 = vsyncpa [#allocation15], 1
    %1810 = vsyncpa [#allocation18], 1
    %1811 = vsyncpa [#allocation10], 1
    %s1812 = scalar_lea.sflag [#allocation10], 1
    %1813 = vsyncpa %s1812, 1

</llo_original>
